<compile_context>
chip_gen: v6e
topology: v6e:2x2x1
jax: 0.10.0
libtpu: 0.0.40
codegen_flags: <defaults>
</compile_context>

<pallas_src>
import functools

import jax
import jax.numpy as jnp
from jax.experimental import pallas as pl
from jax.experimental.pallas import tpu as pltpu

GEM_EPS = 1e-6   # gem(..., eps=1e-6)
BN_EPS = 1e-5    # nn.BatchNorm1d default eps
L2_EPS = 1e-12   # F.normalize default eps


def _isc_head_kernel(x_ref, w_ref, scale_ref, shift_ref, o_ref, acc_ref,
                     *, p, n_hw, inv_hw):
    """Fused GeM-pool -> fc -> folded BatchNorm1d(eval) -> L2-normalize.

    x_ref:     (Bt, C, HWt)  native dtype   backbone feature map tile (channels on sublanes)
    w_ref:     (C, F)        f32            fc weight^T (1/HW folded in when p == 1)
    scale_ref: (1, F)        f32            gamma * rsqrt(var + eps)
    shift_ref: (1, F)        f32            beta - mean * scale
    o_ref:     (Bt, F)       f32            output embeddings (unit L2 norm)
    acc_ref:   (Bt, C)       f32 scratch    pooled-sum accumulator across HW tiles
    """
    hw_step = pl.program_id(1)

    @pl.when(hw_step == 0)
    def _init():
        acc_ref[...] = jnp.zeros_like(acc_ref)

    # Cast to f32 immediately after load (v5e has no bf16 VPU); clamp + reduce
    # over the lane axis (XLU) — all hidden under the x DMA.
    x = x_ref[...].astype(jnp.float32)                    # (Bt, C, HWt)
    xc = jnp.maximum(x, GEM_EPS)
    if p == 1.0:
        acc_ref[...] += jnp.sum(xc, axis=-1)              # 1/HW folded into w
    else:
        acc_ref[...] += jnp.sum(xc ** p, axis=-1)         # general-p path

    @pl.when(hw_step == n_hw - 1)
    def _finalize():
        pooled = acc_ref[...]                             # (Bt, C), lane-dense in C
        if p != 1.0:
            pooled = (pooled * inv_hw) ** (1.0 / p)

        # fc (Linear, bias=False) on the MXU.
        y = jnp.dot(pooled, w_ref[...], preferred_element_type=jnp.float32)

        # BatchNorm1d (eval mode), folded into a single affine transform.
        y = y * scale_ref[...] + shift_ref[...]

        # F.normalize: L2 normalization along the feature dim (rsqrt on EUP).
        sumsq = jnp.sum(y * y, axis=-1, keepdims=True)
        o_ref[...] = y * jax.lax.rsqrt(jnp.maximum(sumsq, L2_EPS * L2_EPS))


def _vmem_capacity_bytes(default=64 << 20):
    """Generation-aware VMEM size; conservative (v7x) fallback."""
    try:
        cap = getattr(pltpu.get_tpu_info(), "vmem_capacity_bytes", None)
        return int(cap) if cap else default
    except Exception:
        return default


def isc_feature_head(feat_nchw, fc_weight, bn_gamma, bn_beta, bn_mean, bn_var,
                     *, p=1.0):
    """Wrapper: NCHW backbone features -> (B, fc_dim) L2-normalized embeddings."""
    B, C, H, W = feat_nchw.shape
    F_dim = fc_weight.shape[0]
    HW = H * W
    p = float(p)

    # Native-layout, native-dtype view: (B, C, H, W) -> (B, C, HW).  No transpose,
    # no f32 upcast — the dominant HBM stream is read exactly once, in place.
    x = feat_nchw.reshape(B, C, HW)
    itemsize = x.dtype.itemsize
    align = 16 if itemsize == 2 else 8                    # sublane packing for bf16

    # fc weight transposed; fold the 1/HW mean factor in when p == 1 (eval path).
    w_t = jnp.transpose(fc_weight).astype(jnp.float32)    # (C, F)
    if p == 1.0:
        w_t = w_t * (1.0 / HW)

    # Fold BatchNorm (eval mode) into scale/shift vectors.
    inv_std = jax.lax.rsqrt(bn_var.astype(jnp.float32) + BN_EPS)
    scale = (bn_gamma.astype(jnp.float32) * inv_std).reshape(1, F_dim)
    shift = (bn_beta.astype(jnp.float32)
             - bn_mean.astype(jnp.float32) * bn_gamma.astype(jnp.float32)
             * inv_std).reshape(1, F_dim)

    # --- Generation-aware tiling -------------------------------------------------
    vmem_cap = _vmem_capacity_bytes()
    x_budget = max(8 << 20, vmem_cap * 3 // 5)            # ~76 MiB v5e/v6e, ~38 MiB v7x

    # Split HW (inner "arbitrary" axis) only if even a minimum batch tile of full
    # rows would not fit the x double-buffer budget.
    hw_tile = HW
    if 2 * align * C * HW * itemsize > x_budget:
        t = (HW // 128) * 128
        while t >= 128:
            if HW % t == 0 and 2 * align * C * t * itemsize <= x_budget:
                hw_tile = t
                break
            t -= 128
    n_hw = HW // hw_tile

    # Batch tile: VMEM-derived, capped at ~B/2 so v7x's two TensorCores both get work.
    vmem_rows = x_budget // (2 * C * hw_tile * itemsize)
    vmem_rows = max(align, (vmem_rows // align) * align)
    half_b = (B + 1) // 2
    b_cap_parallel = max(align, ((half_b + align - 1) // align) * align)
    b_tile = max(align, min(vmem_rows, b_cap_parallel))

    n_b = pl.cdiv(B, b_tile)
    B_pad = n_b * b_tile
    if B_pad != B:
        # Zero-padded rows are harmless (clamped by GeM eps, sliced off below).
        x = jnp.pad(x, ((0, B_pad - B), (0, 0), (0, 0)))

    # Explicit VMEM limit: double-buffered x + resident weight/BN + output + scratch.
    vmem_needed = (2 * b_tile * C * hw_tile * itemsize     # x (double buffered)
                   + 2 * C * F_dim * 4                     # fc weight
                   + 4 * 8 * F_dim * 4                     # scale + shift (padded rows)
                   + 2 * b_tile * F_dim * 4                # output
                   + b_tile * C * 4)                       # pooled accumulator
    vmem_limit = int(min(max(vmem_needed + (4 << 20), 32 << 20), vmem_cap * 7 // 8))

    cost = pl.CostEstimate(
        flops=2 * B_pad * C * F_dim + B_pad * HW * C,
        transcendentals=0 if p == 1.0 else 2 * B_pad * HW * C,
        bytes_accessed=(B_pad * HW * C * itemsize + C * F_dim * 4
                        + 2 * F_dim * 4 + B_pad * F_dim * 4),
    )

    kernel = functools.partial(_isc_head_kernel, p=p, n_hw=n_hw, inv_hw=1.0 / HW)

    out = pl.pallas_call(
        kernel,
        out_shape=jax.ShapeDtypeStruct((B_pad, F_dim), jnp.float32),
        grid_spec=pltpu.PrefetchScalarGridSpec(
            num_scalar_prefetch=0,
            grid=(n_b, n_hw),
            in_specs=[
                pl.BlockSpec((b_tile, C, hw_tile), lambda i, k: (i, 0, k)),  # streamed
                pl.BlockSpec((C, F_dim), lambda i, k: (0, 0)),               # resident
                pl.BlockSpec((1, F_dim), lambda i, k: (0, 0)),               # resident
                pl.BlockSpec((1, F_dim), lambda i, k: (0, 0)),               # resident
            ],
            out_specs=pl.BlockSpec((b_tile, F_dim), lambda i, k: (i, 0)),
            scratch_shapes=[pltpu.VMEM((b_tile, C), jnp.float32)],
        ),
        compiler_params=pltpu.CompilerParams(
            dimension_semantics=("parallel", "arbitrary"),  # batch across TCs, HW reduce
            vmem_limit_bytes=vmem_limit,
        ),
        cost_estimate=cost,
    )(x, w_t, scale, shift)

    return out[:B]


def _reference(feat_nchw, fc_weight, bn_gamma, bn_beta, bn_mean, bn_var, p):
    """Pure-JAX reference mirroring the PyTorch ISCNet forward (eval mode)."""
    B = feat_nchw.shape[0]
    xc = jnp.maximum(feat_nchw.astype(jnp.float32), GEM_EPS)
    pooled = jnp.mean(xc ** p, axis=(-2, -1)) ** (1.0 / p)        # (B, C)
    y = jnp.matmul(pooled.reshape(B, -1), fc_weight.T,
                   precision=jax.lax.Precision.HIGHEST)           # fc, no bias
    y = (y - bn_mean) / jnp.sqrt(bn_var + BN_EPS) * bn_gamma + bn_beta
    nrm = jnp.sqrt(jnp.sum(y * y, axis=-1, keepdims=True))
    return y / jnp.maximum(nrm, L2_EPS)


if __name__ == "__main__":
    # Small, self-consistent shapes standing in for the real model
    # (real: C=1280 backbone channels, fc_dim=256, 16x16 feature map @ 512px).
    B, C, H, W = 2, 128, 8, 8
    FC_DIM = 256
    EVAL_P = 1.0   # ISCNet eval_p (eval mode in forward)

    key = jax.random.PRNGKey(0)
    k_feat, k_fc = jax.random.split(key)

    # Synthetic backbone output features, streamed in bf16 (native backbone dtype).
    feat = jax.random.normal(k_feat, (B, C, H, W), dtype=jnp.float32).astype(jnp.bfloat16)

    # Deterministic parameter init matching ISCNet._init_params:
    #   xavier_normal_ on fc.weight, bn.weight=1, bn.bias=0, running stats 0/1.
    xavier_std = (2.0 / (C + FC_DIM)) ** 0.5
    fc_weight = xavier_std * jax.random.normal(k_fc, (FC_DIM, C), dtype=jnp.float32)
    bn_gamma = jnp.ones((FC_DIM,), jnp.float32)
    bn_beta = jnp.zeros((FC_DIM,), jnp.float32)
    bn_mean = jnp.zeros((FC_DIM,), jnp.float32)
    bn_var = jnp.ones((FC_DIM,), jnp.float32)

    out = isc_feature_head(feat, fc_weight, bn_gamma, bn_beta, bn_mean, bn_var,
                           p=EVAL_P)
    out = jax.block_until_ready(out)

    ref = _reference(feat.astype(jnp.float32), fc_weight, bn_gamma, bn_beta,
                     bn_mean, bn_var, EVAL_P)
    assert out.shape == (B, FC_DIM)
    assert jnp.allclose(out, ref, atol=2e-5, rtol=1e-5), "mismatch vs reference"

    print("KERNEL_OK")
</pallas_src>

<mosaic_0001>
module attributes {stable_mosaic.version = 11 : i64} {
  func.func @_isc_head_kernel(%arg0: i32, %arg1: i32, %arg2: memref<16x128x64xbf16, #tpu.memory_space<vmem>>, %arg3: memref<128x256xf32, #tpu.memory_space<vmem>>, %arg4: memref<1x256xf32, #tpu.memory_space<vmem>>, %arg5: memref<1x256xf32, #tpu.memory_space<vmem>>, %arg6: memref<16x256xf32, #tpu.memory_space<vmem>>, %arg7: memref<16x128xf32, #tpu.memory_space<vmem>>) attributes {dimension_semantics = [#tpu.dimension_semantics<parallel>, #tpu.dimension_semantics<arbitrary>], iteration_bounds = array<i64: 1, 1>, scalar_prefetch = 0 : i64, scratch_operands = 1 : i64, tpu.core_type = #tpu.core_type<tc>, window_params = [{transform_indices = @transform_0, window_bounds = array<i64: 16, 128, 64>}, {pipeline_mode = #tpu.pipeline_mode<synchronous>, transform_indices = @transform_1, window_bounds = array<i64: 128, 256>}, {pipeline_mode = #tpu.pipeline_mode<synchronous>, transform_indices = @transform_2, window_bounds = array<i64: 1, 256>}, {pipeline_mode = #tpu.pipeline_mode<synchronous>, transform_indices = @transform_3, window_bounds = array<i64: 1, 256>}, {transform_indices = @transform_4, window_bounds = array<i64: 16, 256>}]} {
    %c0_i32 = arith.constant 0 : i32
    %0 = arith.cmpi eq, %arg1, %c0_i32 : i32
    %1 = arith.extui %0 : i1 to i32
    %c0_i32_0 = arith.constant 0 : i32
    %2 = arith.cmpi ne, %1, %c0_i32_0 : i32
    scf.if %2 {
      %cst_10 = arith.constant 0.000000e+00 : f32
      %14 = vector.broadcast %cst_10 : f32 to vector<16x128xf32>
      %c0_11 = arith.constant 0 : index
      %c0_12 = arith.constant 0 : index
      %15 = vector.load %arg7[%c0_11, %c0_12] : memref<16x128xf32, #tpu.memory_space<vmem>>, vector<16x128xf32>
      tpu.vector_store %arg7[%c0_11, %c0_12], %14 {strides = array<i32>} : memref<16x128xf32, #tpu.memory_space<vmem>>, vector<16x128xf32>,
    } else {
    }
    %c0 = arith.constant 0 : index
    %c0_1 = arith.constant 0 : index
    %c0_2 = arith.constant 0 : index
    %3 = vector.load %arg2[%c0, %c0_1, %c0_2] : memref<16x128x64xbf16, #tpu.memory_space<vmem>>, vector<16x128x64xbf16>
    %4 = arith.extf %3 : vector<16x128x64xbf16> to vector<16x128x64xf32>
    %cst = arith.constant 9.99999997E-7 : f32
    %5 = vector.broadcast %cst : f32 to vector<16x128x64xf32>
    %6 = arith.maximumf %4, %5 : vector<16x128x64xf32>
    %c0_3 = arith.constant 0 : index
    %c0_4 = arith.constant 0 : index
    %7 = vector.load %arg7[%c0_3, %c0_4] : memref<16x128xf32, #tpu.memory_space<vmem>>, vector<16x128xf32>
    %cst_5 = arith.constant dense<0.000000e+00> : vector<16x128xf32>
    %8 = vector.multi_reduction <add>, %6, %cst_5 [2] : vector<16x128x64xf32> to vector<16x128xf32>
    %9 = arith.addf %7, %8 : vector<16x128xf32>
    %c0_6 = arith.constant 0 : index
    %c0_7 = arith.constant 0 : index
    %10 = vector.load %arg7[%c0_6, %c0_7] : memref<16x128xf32, #tpu.memory_space<vmem>>, vector<16x128xf32>
    tpu.vector_store %arg7[%c0_6, %c0_7], %9 {strides = array<i32>} : memref<16x128xf32, #tpu.memory_space<vmem>>, vector<16x128xf32>,
    %c0_i32_8 = arith.constant 0 : i32
    %11 = arith.cmpi eq, %arg1, %c0_i32_8 : i32
    %12 = arith.extui %11 : i1 to i32
    %c0_i32_9 = arith.constant 0 : i32
    %13 = arith.cmpi ne, %12, %c0_i32_9 : i32
    scf.if %13 {
      %c0_10 = arith.constant 0 : index
      %c0_11 = arith.constant 0 : index
      %14 = vector.load %arg7[%c0_10, %c0_11] : memref<16x128xf32, #tpu.memory_space<vmem>>, vector<16x128xf32>
      %c0_12 = arith.constant 0 : index
      %c0_13 = arith.constant 0 : index
      %15 = vector.load %arg3[%c0_12, %c0_13] : memref<128x256xf32, #tpu.memory_space<vmem>>, vector<128x256xf32>
      %cst_14 = arith.constant dense<0.000000e+00> : vector<16x256xf32>
      %16 = tpu.matmul %14, %15, %cst_14 {dimension_numbers = #tpu.dot_dimension_numbers<[1], [0], [0], [1], [0, 0, 1, 1], [], []>} : vector<16x128xf32>, vector<128x256xf32>, vector<16x256xf32> -> vector<16x256xf32>
      %c0_15 = arith.constant 0 : index
      %c0_16 = arith.constant 0 : index
      %17 = vector.load %arg4[%c0_15, %c0_16] : memref<1x256xf32, #tpu.memory_space<vmem>>, vector<1x256xf32>
      %18 = vector.broadcast %17 : vector<1x256xf32> to vector<16x256xf32>
      %19 = arith.mulf %16, %18 : vector<16x256xf32>
      %c0_17 = arith.constant 0 : index
      %c0_18 = arith.constant 0 : index
      %20 = vector.load %arg5[%c0_17, %c0_18] : memref<1x256xf32, #tpu.memory_space<vmem>>, vector<1x256xf32>
      %21 = vector.broadcast %20 : vector<1x256xf32> to vector<16x256xf32>
      %22 = arith.addf %19, %21 : vector<16x256xf32>
      %23 = arith.mulf %22, %22 : vector<16x256xf32>
      %cst_19 = arith.constant dense<0.000000e+00> : vector<16xf32>
      %24 = vector.multi_reduction <add>, %23, %cst_19 [1] : vector<16x256xf32> to vector<16xf32>
      %25 = vector.shape_cast %24 : vector<16xf32> to vector<16x1xf32>
      %cst_20 = arith.constant 1.000000e-24 : f32
      %26 = vector.broadcast %cst_20 : f32 to vector<16x1xf32>
      %27 = arith.maximumf %25, %26 : vector<16x1xf32>
      %28 = math.rsqrt %27 : vector<16x1xf32>
      %29 = vector.broadcast %28 : vector<16x1xf32> to vector<16x256xf32>
      %30 = arith.mulf %22, %29 : vector<16x256xf32>
      %c0_21 = arith.constant 0 : index
      %c0_22 = arith.constant 0 : index
      %31 = vector.load %arg6[%c0_21, %c0_22] : memref<16x256xf32, #tpu.memory_space<vmem>>, vector<16x256xf32>
      tpu.vector_store %arg6[%c0_21, %c0_22], %30 {strides = array<i32>} : memref<16x256xf32, #tpu.memory_space<vmem>>, vector<16x256xf32>,
    } else {
    }
    return
  }
  func.func @transform_0(%arg0: i32, %arg1: i32) -> (i32, i32, i32) {
    %c0_i32 = arith.constant 0 : i32
    %c0_i32_0 = arith.constant 0 : i32
    return %arg0, %c0_i32, %arg1 : i32, i32, i32
  }
  func.func @transform_1(%arg0: i32, %arg1: i32) -> (i32, i32) {
    %c0_i32 = arith.constant 0 : i32
    %c0_i32_0 = arith.constant 0 : i32
    %c0_i32_1 = arith.constant 0 : i32
    return %c0_i32, %c0_i32_0 : i32, i32
  }
  func.func @transform_2(%arg0: i32, %arg1: i32) -> (i32, i32) {
    %c0_i32 = arith.constant 0 : i32
    %c0_i32_0 = arith.constant 0 : i32
    %c0_i32_1 = arith.constant 0 : i32
    return %c0_i32, %c0_i32_0 : i32, i32
  }
  func.func @transform_3(%arg0: i32, %arg1: i32) -> (i32, i32) {
    %c0_i32 = arith.constant 0 : i32
    %c0_i32_0 = arith.constant 0 : i32
    %c0_i32_1 = arith.constant 0 : i32
    return %c0_i32, %c0_i32_0 : i32, i32
  }
  func.func @transform_4(%arg0: i32, %arg1: i32) -> (i32, i32) {
    %c0_i32 = arith.constant 0 : i32
    %c0_i32_0 = arith.constant 0 : i32
    return %arg0, %c0_i32 : i32, i32
  }
}

</mosaic_0001>

<llo_original>
// kernel: tpu_custom_call.1
$region0: #{tpu_custom_call.1}
  #allocation0 [shape = 'u32[]', space=smem, size = 0x4, offset = 0x4, fixed_abs, tag = 'smem constant byte address 0x4 - core index']
  #allocation1 [shape = 'u32[144,128]{1,0:T(1,128)}', space=vmem, size = 0x12000, scoped, tag = 'internal scratch']
  #allocation2 [shape = 'f32[16,128]{1,0:T(8,128)}', space=vmem, size = 0x2000, scoped, tag = 'scratch operand']
  %s0 = inlined_call_operand.vmem [shape: bf16[16,128,64], index: 0, kind: input, shape index: {}]
  %s1 = inlined_call_operand.vmem [shape: f32[128,256], index: 1, kind: input, shape index: {}]
  %s2 = inlined_call_operand.vmem [shape: f32[1,256], index: 2, kind: input, shape index: {}]
  %s3 = inlined_call_operand.vmem [shape: f32[1,256], index: 3, kind: input, shape index: {}]
  %s4 = inlined_call_operand.hbm [shape: f32[16,256], index: 4, kind: output, shape index: {}]
  %s5 = sld [smem:[#allocation0]]
  $region34: #{tpu_custom_call.1} parent=0
    _
  %s7 = ssub.s32 1, %s5
  %s8 = scalar_select 0, %s7, %s5
  $region1: #{tpu_custom_call.1} parent=0
    #allocation3 [shape = 'u8[16384]{0}', space=vmem, size = 0x4000, scoped, tag = 'output window, operand 0, single buffered']
    #allocation4 [shape = 's32[1]{0}', space=sflag, size = 0x4, scoped, tag = 'scoped memory for tpu_custom_call.1']
    %9 = vsyncpa [#allocation4], 0
    // Predicated region
    $region2: #{tpu_custom_call.1} parent=1 // pred_check
      _
    $region3: #{tpu_custom_call.1} parent=1 // pred_check_branch
      %11 = sbr.rel (0) target = $region5
    $region4: #{tpu_custom_call.1} parent=1 // pred_region
      _
    $region5: #{tpu_custom_call.1} parent=1 // pred_fallthru
      _
    // Predicated region
    $region6: #{tpu_custom_call.1} parent=1 // pred_check
      _
    $region7: #{tpu_custom_call.1} parent=1 // pred_check_branch
      %13 = sbr.rel (0) target = $region9
    $region8: #{tpu_custom_call.1} parent=1 // pred_region
      _
    $region9: #{tpu_custom_call.1} parent=1 // pred_fallthru
      _
    // Predicated region
    $region10: #{tpu_custom_call.1} parent=1 // pred_check
      _
    $region11: #{tpu_custom_call.1} parent=1 // pred_check_branch
      %15 = sbr.rel (0) target = $region13
    $region12: #{tpu_custom_call.1} parent=1 // pred_region
      _
    $region13: #{tpu_custom_call.1} parent=1 // pred_fallthru
      _
    // Predicated region
    $region14: #{tpu_custom_call.1} parent=1 // pred_check
      _
    $region15: #{tpu_custom_call.1} parent=1 // pred_check_branch
      %17 = sbr.rel (0) target = $region17
    $region16: #{tpu_custom_call.1} parent=1 // pred_region
      _
    $region17: #{tpu_custom_call.1} parent=1 // pred_fallthru
      _
    %p18 = scmp.eq.s32.totalorder 0, 0
    // Predicated region
    $region18: #{tpu_custom_call.1} parent=1 // pred_check
      %p19 = pneg %p18
    $region19: #{tpu_custom_call.1} parent=1 // pred_check_branch
      %21 = sbr.rel (%p19) target = $region21
    $region20: #{tpu_custom_call.1} parent=1 // pred_region
      %22 = vst [vmem:[#allocation2] sm:$0xff] 0.0
      %23 = vst [vmem:[#allocation2 + $0x8] sm:$0xff] 0.0
    $region21: #{tpu_custom_call.1} parent=1 // pred_fallthru
      _
    %v24 = vld [vmem:[%s0] sm:$0xf]
    %v25 = vld [vmem:[%s0 + $0x4] sm:$0xf]
    %v26 = vld [vmem:[%s0 + $0x8] sm:$0xf]
    %v27 = vld [vmem:[%s0 + $0xc] sm:$0xf]
    %v28 = vld [vmem:[%s0 + $0x10] sm:$0xf]
    %v29 = vld [vmem:[%s0 + $0x14] sm:$0xf]
    %v30 = vld [vmem:[%s0 + $0x18] sm:$0xf]
    %v31 = vld [vmem:[%s0 + $0x1c] sm:$0xf]
    %v32 = vld [vmem:[%s0 + $0x20] sm:$0xf]
    %v33 = vld [vmem:[%s0 + $0x24] sm:$0xf]
    %v34 = vld [vmem:[%s0 + $0x28] sm:$0xf]
    %v35 = vld [vmem:[%s0 + $0x2c] sm:$0xf]
    %v36 = vld [vmem:[%s0 + $0x30] sm:$0xf]
    %v37 = vld [vmem:[%s0 + $0x34] sm:$0xf]
    %v38 = vld [vmem:[%s0 + $0x38] sm:$0xf]
    %v39 = vld [vmem:[%s0 + $0x3c] sm:$0xf]
    %v40 = vld [vmem:[%s0 + $0x40] sm:$0xf]
    %v41 = vld [vmem:[%s0 + $0x44] sm:$0xf]
    %v42 = vld [vmem:[%s0 + $0x48] sm:$0xf]
    %v43 = vld [vmem:[%s0 + $0x4c] sm:$0xf]
    %v44 = vld [vmem:[%s0 + $0x50] sm:$0xf]
    %v45 = vld [vmem:[%s0 + $0x54] sm:$0xf]
    %v46 = vld [vmem:[%s0 + $0x58] sm:$0xf]
    %v47 = vld [vmem:[%s0 + $0x5c] sm:$0xf]
    %v48 = vld [vmem:[%s0 + $0x60] sm:$0xf]
    %v49 = vld [vmem:[%s0 + $0x64] sm:$0xf]
    %v50 = vld [vmem:[%s0 + $0x68] sm:$0xf]
    %v51 = vld [vmem:[%s0 + $0x6c] sm:$0xf]
    %v52 = vld [vmem:[%s0 + $0x70] sm:$0xf]
    %v53 = vld [vmem:[%s0 + $0x74] sm:$0xf]
    %v54 = vld [vmem:[%s0 + $0x78] sm:$0xf]
    %v55 = vld [vmem:[%s0 + $0x7c] sm:$0xf]
    %v56 = vld [vmem:[%s0 + $0x80] sm:$0xf]
    %v57 = vld [vmem:[%s0 + $0x84] sm:$0xf]
    %v58 = vld [vmem:[%s0 + $0x88] sm:$0xf]
    %v59 = vld [vmem:[%s0 + $0x8c] sm:$0xf]
    %v60 = vld [vmem:[%s0 + $0x90] sm:$0xf]
    %v61 = vld [vmem:[%s0 + $0x94] sm:$0xf]
    %v62 = vld [vmem:[%s0 + $0x98] sm:$0xf]
    %v63 = vld [vmem:[%s0 + $0x9c] sm:$0xf]
    %v64 = vld [vmem:[%s0 + $0xa0] sm:$0xf]
    %v65 = vld [vmem:[%s0 + $0xa4] sm:$0xf]
    %v66 = vld [vmem:[%s0 + $0xa8] sm:$0xf]
    %v67 = vld [vmem:[%s0 + $0xac] sm:$0xf]
    %v68 = vld [vmem:[%s0 + $0xb0] sm:$0xf]
    %v69 = vld [vmem:[%s0 + $0xb4] sm:$0xf]
    %v70 = vld [vmem:[%s0 + $0xb8] sm:$0xf]
    %v71 = vld [vmem:[%s0 + $0xbc] sm:$0xf]
    %v72 = vld [vmem:[%s0 + $0xc0] sm:$0xf]
    %v73 = vld [vmem:[%s0 + $0xc4] sm:$0xf]
    %v74 = vld [vmem:[%s0 + $0xc8] sm:$0xf]
    %v75 = vld [vmem:[%s0 + $0xcc] sm:$0xf]
    %v76 = vld [vmem:[%s0 + $0xd0] sm:$0xf]
    %v77 = vld [vmem:[%s0 + $0xd4] sm:$0xf]
    %v78 = vld [vmem:[%s0 + $0xd8] sm:$0xf]
    %v79 = vld [vmem:[%s0 + $0xdc] sm:$0xf]
    %v80 = vld [vmem:[%s0 + $0xe0] sm:$0xf]
    %v81 = vld [vmem:[%s0 + $0xe4] sm:$0xf]
    %v82 = vld [vmem:[%s0 + $0xe8] sm:$0xf]
    %v83 = vld [vmem:[%s0 + $0xec] sm:$0xf]
    %v84 = vld [vmem:[%s0 + $0xf0] sm:$0xf]
    %v85 = vld [vmem:[%s0 + $0xf4] sm:$0xf]
    %v86 = vld [vmem:[%s0 + $0xf8] sm:$0xf]
    %v87 = vld [vmem:[%s0 + $0xfc] sm:$0xf]
    %v88 = vld [vmem:[%s0 + $0x100] sm:$0xf]
    %v89 = vld [vmem:[%s0 + $0x104] sm:$0xf]
    %v90 = vld [vmem:[%s0 + $0x108] sm:$0xf]
    %v91 = vld [vmem:[%s0 + $0x10c] sm:$0xf]
    %v92 = vld [vmem:[%s0 + $0x110] sm:$0xf]
    %v93 = vld [vmem:[%s0 + $0x114] sm:$0xf]
    %v94 = vld [vmem:[%s0 + $0x118] sm:$0xf]
    %v95 = vld [vmem:[%s0 + $0x11c] sm:$0xf]
    %v96 = vld [vmem:[%s0 + $0x120] sm:$0xf]
    %v97 = vld [vmem:[%s0 + $0x124] sm:$0xf]
    %v98 = vld [vmem:[%s0 + $0x128] sm:$0xf]
    %v99 = vld [vmem:[%s0 + $0x12c] sm:$0xf]
    %v100 = vld [vmem:[%s0 + $0x130] sm:$0xf]
    %v101 = vld [vmem:[%s0 + $0x134] sm:$0xf]
    %v102 = vld [vmem:[%s0 + $0x138] sm:$0xf]
    %v103 = vld [vmem:[%s0 + $0x13c] sm:$0xf]
    %v104 = vld [vmem:[%s0 + $0x140] sm:$0xf]
    %v105 = vld [vmem:[%s0 + $0x144] sm:$0xf]
    %v106 = vld [vmem:[%s0 + $0x148] sm:$0xf]
    %v107 = vld [vmem:[%s0 + $0x14c] sm:$0xf]
    %v108 = vld [vmem:[%s0 + $0x150] sm:$0xf]
    %v109 = vld [vmem:[%s0 + $0x154] sm:$0xf]
    %v110 = vld [vmem:[%s0 + $0x158] sm:$0xf]
    %v111 = vld [vmem:[%s0 + $0x15c] sm:$0xf]
    %v112 = vld [vmem:[%s0 + $0x160] sm:$0xf]
    %v113 = vld [vmem:[%s0 + $0x164] sm:$0xf]
    %v114 = vld [vmem:[%s0 + $0x168] sm:$0xf]
    %v115 = vld [vmem:[%s0 + $0x16c] sm:$0xf]
    %v116 = vld [vmem:[%s0 + $0x170] sm:$0xf]
    %v117 = vld [vmem:[%s0 + $0x174] sm:$0xf]
    %v118 = vld [vmem:[%s0 + $0x178] sm:$0xf]
    %v119 = vld [vmem:[%s0 + $0x17c] sm:$0xf]
    %v120 = vld [vmem:[%s0 + $0x180] sm:$0xf]
    %v121 = vld [vmem:[%s0 + $0x184] sm:$0xf]
    %v122 = vld [vmem:[%s0 + $0x188] sm:$0xf]
    %v123 = vld [vmem:[%s0 + $0x18c] sm:$0xf]
    %v124 = vld [vmem:[%s0 + $0x190] sm:$0xf]
    %v125 = vld [vmem:[%s0 + $0x194] sm:$0xf]
    %v126 = vld [vmem:[%s0 + $0x198] sm:$0xf]
    %v127 = vld [vmem:[%s0 + $0x19c] sm:$0xf]
    %v128 = vld [vmem:[%s0 + $0x1a0] sm:$0xf]
    %v129 = vld [vmem:[%s0 + $0x1a4] sm:$0xf]
    %v130 = vld [vmem:[%s0 + $0x1a8] sm:$0xf]
    %v131 = vld [vmem:[%s0 + $0x1ac] sm:$0xf]
    %v132 = vld [vmem:[%s0 + $0x1b0] sm:$0xf]
    %v133 = vld [vmem:[%s0 + $0x1b4] sm:$0xf]
    %v134 = vld [vmem:[%s0 + $0x1b8] sm:$0xf]
    %v135 = vld [vmem:[%s0 + $0x1bc] sm:$0xf]
    %v136 = vld [vmem:[%s0 + $0x1c0] sm:$0xf]
    %v137 = vld [vmem:[%s0 + $0x1c4] sm:$0xf]
    %v138 = vld [vmem:[%s0 + $0x1c8] sm:$0xf]
    %v139 = vld [vmem:[%s0 + $0x1cc] sm:$0xf]
    %v140 = vld [vmem:[%s0 + $0x1d0] sm:$0xf]
    %v141 = vld [vmem:[%s0 + $0x1d4] sm:$0xf]
    %v142 = vld [vmem:[%s0 + $0x1d8] sm:$0xf]
    %v143 = vld [vmem:[%s0 + $0x1dc] sm:$0xf]
    %v144 = vld [vmem:[%s0 + $0x1e0] sm:$0xf]
    %v145 = vld [vmem:[%s0 + $0x1e4] sm:$0xf]
    %v146 = vld [vmem:[%s0 + $0x1e8] sm:$0xf]
    %v147 = vld [vmem:[%s0 + $0x1ec] sm:$0xf]
    %v148 = vld [vmem:[%s0 + $0x1f0] sm:$0xf]
    %v149 = vld [vmem:[%s0 + $0x1f4] sm:$0xf]
    %v150 = vld [vmem:[%s0 + $0x1f8] sm:$0xf]
    %v151 = vld [vmem:[%s0 + $0x1fc] sm:$0xf]
    %v152 = vld [vmem:[%s0 + $0x200] sm:$0xf]
    %v153 = vld [vmem:[%s0 + $0x204] sm:$0xf]
    %v154 = vld [vmem:[%s0 + $0x208] sm:$0xf]
    %v155 = vld [vmem:[%s0 + $0x20c] sm:$0xf]
    %v156 = vld [vmem:[%s0 + $0x210] sm:$0xf]
    %v157 = vld [vmem:[%s0 + $0x214] sm:$0xf]
    %v158 = vld [vmem:[%s0 + $0x218] sm:$0xf]
    %v159 = vld [vmem:[%s0 + $0x21c] sm:$0xf]
    %v160 = vld [vmem:[%s0 + $0x220] sm:$0xf]
    %v161 = vld [vmem:[%s0 + $0x224] sm:$0xf]
    %v162 = vld [vmem:[%s0 + $0x228] sm:$0xf]
    %v163 = vld [vmem:[%s0 + $0x22c] sm:$0xf]
    %v164 = vld [vmem:[%s0 + $0x230] sm:$0xf]
    %v165 = vld [vmem:[%s0 + $0x234] sm:$0xf]
    %v166 = vld [vmem:[%s0 + $0x238] sm:$0xf]
    %v167 = vld [vmem:[%s0 + $0x23c] sm:$0xf]
    %v168 = vld [vmem:[%s0 + $0x240] sm:$0xf]
    %v169 = vld [vmem:[%s0 + $0x244] sm:$0xf]
    %v170 = vld [vmem:[%s0 + $0x248] sm:$0xf]
    %v171 = vld [vmem:[%s0 + $0x24c] sm:$0xf]
    %v172 = vld [vmem:[%s0 + $0x250] sm:$0xf]
    %v173 = vld [vmem:[%s0 + $0x254] sm:$0xf]
    %v174 = vld [vmem:[%s0 + $0x258] sm:$0xf]
    %v175 = vld [vmem:[%s0 + $0x25c] sm:$0xf]
    %v176 = vld [vmem:[%s0 + $0x260] sm:$0xf]
    %v177 = vld [vmem:[%s0 + $0x264] sm:$0xf]
    %v178 = vld [vmem:[%s0 + $0x268] sm:$0xf]
    %v179 = vld [vmem:[%s0 + $0x26c] sm:$0xf]
    %v180 = vld [vmem:[%s0 + $0x270] sm:$0xf]
    %v181 = vld [vmem:[%s0 + $0x274] sm:$0xf]
    %v182 = vld [vmem:[%s0 + $0x278] sm:$0xf]
    %v183 = vld [vmem:[%s0 + $0x27c] sm:$0xf]
    %v184 = vld [vmem:[%s0 + $0x280] sm:$0xf]
    %v185 = vld [vmem:[%s0 + $0x284] sm:$0xf]
    %v186 = vld [vmem:[%s0 + $0x288] sm:$0xf]
    %v187 = vld [vmem:[%s0 + $0x28c] sm:$0xf]
    %v188 = vld [vmem:[%s0 + $0x290] sm:$0xf]
    %v189 = vld [vmem:[%s0 + $0x294] sm:$0xf]
    %v190 = vld [vmem:[%s0 + $0x298] sm:$0xf]
    %v191 = vld [vmem:[%s0 + $0x29c] sm:$0xf]
    %v192 = vld [vmem:[%s0 + $0x2a0] sm:$0xf]
    %v193 = vld [vmem:[%s0 + $0x2a4] sm:$0xf]
    %v194 = vld [vmem:[%s0 + $0x2a8] sm:$0xf]
    %v195 = vld [vmem:[%s0 + $0x2ac] sm:$0xf]
    %v196 = vld [vmem:[%s0 + $0x2b0] sm:$0xf]
    %v197 = vld [vmem:[%s0 + $0x2b4] sm:$0xf]
    %v198 = vld [vmem:[%s0 + $0x2b8] sm:$0xf]
    %v199 = vld [vmem:[%s0 + $0x2bc] sm:$0xf]
    %v200 = vld [vmem:[%s0 + $0x2c0] sm:$0xf]
    %v201 = vld [vmem:[%s0 + $0x2c4] sm:$0xf]
    %v202 = vld [vmem:[%s0 + $0x2c8] sm:$0xf]
    %v203 = vld [vmem:[%s0 + $0x2cc] sm:$0xf]
    %v204 = vld [vmem:[%s0 + $0x2d0] sm:$0xf]
    %v205 = vld [vmem:[%s0 + $0x2d4] sm:$0xf]
    %v206 = vld [vmem:[%s0 + $0x2d8] sm:$0xf]
    %v207 = vld [vmem:[%s0 + $0x2dc] sm:$0xf]
    %v208 = vld [vmem:[%s0 + $0x2e0] sm:$0xf]
    %v209 = vld [vmem:[%s0 + $0x2e4] sm:$0xf]
    %v210 = vld [vmem:[%s0 + $0x2e8] sm:$0xf]
    %v211 = vld [vmem:[%s0 + $0x2ec] sm:$0xf]
    %v212 = vld [vmem:[%s0 + $0x2f0] sm:$0xf]
    %v213 = vld [vmem:[%s0 + $0x2f4] sm:$0xf]
    %v214 = vld [vmem:[%s0 + $0x2f8] sm:$0xf]
    %v215 = vld [vmem:[%s0 + $0x2fc] sm:$0xf]
    %v216 = vld [vmem:[%s0 + $0x300] sm:$0xf]
    %v217 = vld [vmem:[%s0 + $0x304] sm:$0xf]
    %v218 = vld [vmem:[%s0 + $0x308] sm:$0xf]
    %v219 = vld [vmem:[%s0 + $0x30c] sm:$0xf]
    %v220 = vld [vmem:[%s0 + $0x310] sm:$0xf]
    %v221 = vld [vmem:[%s0 + $0x314] sm:$0xf]
    %v222 = vld [vmem:[%s0 + $0x318] sm:$0xf]
    %v223 = vld [vmem:[%s0 + $0x31c] sm:$0xf]
    %v224 = vld [vmem:[%s0 + $0x320] sm:$0xf]
    %v225 = vld [vmem:[%s0 + $0x324] sm:$0xf]
    %v226 = vld [vmem:[%s0 + $0x328] sm:$0xf]
    %v227 = vld [vmem:[%s0 + $0x32c] sm:$0xf]
    %v228 = vld [vmem:[%s0 + $0x330] sm:$0xf]
    %v229 = vld [vmem:[%s0 + $0x334] sm:$0xf]
    %v230 = vld [vmem:[%s0 + $0x338] sm:$0xf]
    %v231 = vld [vmem:[%s0 + $0x33c] sm:$0xf]
    %v232 = vld [vmem:[%s0 + $0x340] sm:$0xf]
    %v233 = vld [vmem:[%s0 + $0x344] sm:$0xf]
    %v234 = vld [vmem:[%s0 + $0x348] sm:$0xf]
    %v235 = vld [vmem:[%s0 + $0x34c] sm:$0xf]
    %v236 = vld [vmem:[%s0 + $0x350] sm:$0xf]
    %v237 = vld [vmem:[%s0 + $0x354] sm:$0xf]
    %v238 = vld [vmem:[%s0 + $0x358] sm:$0xf]
    %v239 = vld [vmem:[%s0 + $0x35c] sm:$0xf]
    %v240 = vld [vmem:[%s0 + $0x360] sm:$0xf]
    %v241 = vld [vmem:[%s0 + $0x364] sm:$0xf]
    %v242 = vld [vmem:[%s0 + $0x368] sm:$0xf]
    %v243 = vld [vmem:[%s0 + $0x36c] sm:$0xf]
    %v244 = vld [vmem:[%s0 + $0x370] sm:$0xf]
    %v245 = vld [vmem:[%s0 + $0x374] sm:$0xf]
    %v246 = vld [vmem:[%s0 + $0x378] sm:$0xf]
    %v247 = vld [vmem:[%s0 + $0x37c] sm:$0xf]
    %v248 = vld [vmem:[%s0 + $0x380] sm:$0xf]
    %v249 = vld [vmem:[%s0 + $0x384] sm:$0xf]
    %v250 = vld [vmem:[%s0 + $0x388] sm:$0xf]
    %v251 = vld [vmem:[%s0 + $0x38c] sm:$0xf]
    %v252 = vld [vmem:[%s0 + $0x390] sm:$0xf]
    %v253 = vld [vmem:[%s0 + $0x394] sm:$0xf]
    %v254 = vld [vmem:[%s0 + $0x398] sm:$0xf]
    %v255 = vld [vmem:[%s0 + $0x39c] sm:$0xf]
    %v256 = vld [vmem:[%s0 + $0x3a0] sm:$0xf]
    %v257 = vld [vmem:[%s0 + $0x3a4] sm:$0xf]
    %v258 = vld [vmem:[%s0 + $0x3a8] sm:$0xf]
    %v259 = vld [vmem:[%s0 + $0x3ac] sm:$0xf]
    %v260 = vld [vmem:[%s0 + $0x3b0] sm:$0xf]
    %v261 = vld [vmem:[%s0 + $0x3b4] sm:$0xf]
    %v262 = vld [vmem:[%s0 + $0x3b8] sm:$0xf]
    %v263 = vld [vmem:[%s0 + $0x3bc] sm:$0xf]
    %v264 = vld [vmem:[%s0 + $0x3c0] sm:$0xf]
    %v265 = vld [vmem:[%s0 + $0x3c4] sm:$0xf]
    %v266 = vld [vmem:[%s0 + $0x3c8] sm:$0xf]
    %v267 = vld [vmem:[%s0 + $0x3cc] sm:$0xf]
    %v268 = vld [vmem:[%s0 + $0x3d0] sm:$0xf]
    %v269 = vld [vmem:[%s0 + $0x3d4] sm:$0xf]
    %v270 = vld [vmem:[%s0 + $0x3d8] sm:$0xf]
    %v271 = vld [vmem:[%s0 + $0x3dc] sm:$0xf]
    %v272 = vld [vmem:[%s0 + $0x3e0] sm:$0xf]
    %v273 = vld [vmem:[%s0 + $0x3e4] sm:$0xf]
    %v274 = vld [vmem:[%s0 + $0x3e8] sm:$0xf]
    %v275 = vld [vmem:[%s0 + $0x3ec] sm:$0xf]
    %v276 = vld [vmem:[%s0 + $0x3f0] sm:$0xf]
    %v277 = vld [vmem:[%s0 + $0x3f4] sm:$0xf]
    %v278 = vld [vmem:[%s0 + $0x3f8] sm:$0xf]
    %v279 = vld [vmem:[%s0 + $0x3fc] sm:$0xf]
    %v280 = vunpack.c.l.bf16 %v24
    %v281 = vunpack.c.l.bf16 %v25
    %v282 = vunpack.c.l.bf16 %v26
    %v283 = vunpack.c.l.bf16 %v27
    %v284 = vunpack.c.l.bf16 %v28
    %v285 = vunpack.c.l.bf16 %v29
    %v286 = vunpack.c.l.bf16 %v30
    %v287 = vunpack.c.l.bf16 %v31
    %v288 = vunpack.c.l.bf16 %v32
    %v289 = vunpack.c.l.bf16 %v33
    %v290 = vunpack.c.l.bf16 %v34
    %v291 = vunpack.c.l.bf16 %v35
    %v292 = vunpack.c.l.bf16 %v36
    %v293 = vunpack.c.l.bf16 %v37
    %v294 = vunpack.c.l.bf16 %v38
    %v295 = vunpack.c.l.bf16 %v39
    %v296 = vunpack.c.l.bf16 %v40
    %v297 = vunpack.c.l.bf16 %v41
    %v298 = vunpack.c.l.bf16 %v42
    %v299 = vunpack.c.l.bf16 %v43
    %v300 = vunpack.c.l.bf16 %v44
    %v301 = vunpack.c.l.bf16 %v45
    %v302 = vunpack.c.l.bf16 %v46
    %v303 = vunpack.c.l.bf16 %v47
    %v304 = vunpack.c.l.bf16 %v48
    %v305 = vunpack.c.l.bf16 %v49
    %v306 = vunpack.c.l.bf16 %v50
    %v307 = vunpack.c.l.bf16 %v51
    %v308 = vunpack.c.l.bf16 %v52
    %v309 = vunpack.c.l.bf16 %v53
    %v310 = vunpack.c.l.bf16 %v54
    %v311 = vunpack.c.l.bf16 %v55
    %v312 = vunpack.c.l.bf16 %v56
    %v313 = vunpack.c.l.bf16 %v57
    %v314 = vunpack.c.l.bf16 %v58
    %v315 = vunpack.c.l.bf16 %v59
    %v316 = vunpack.c.l.bf16 %v60
    %v317 = vunpack.c.l.bf16 %v61
    %v318 = vunpack.c.l.bf16 %v62
    %v319 = vunpack.c.l.bf16 %v63
    %v320 = vunpack.c.l.bf16 %v64
    %v321 = vunpack.c.l.bf16 %v65
    %v322 = vunpack.c.l.bf16 %v66
    %v323 = vunpack.c.l.bf16 %v67
    %v324 = vunpack.c.l.bf16 %v68
    %v325 = vunpack.c.l.bf16 %v69
    %v326 = vunpack.c.l.bf16 %v70
    %v327 = vunpack.c.l.bf16 %v71
    %v328 = vunpack.c.l.bf16 %v72
    %v329 = vunpack.c.l.bf16 %v73
    %v330 = vunpack.c.l.bf16 %v74
    %v331 = vunpack.c.l.bf16 %v75
    %v332 = vunpack.c.l.bf16 %v76
    %v333 = vunpack.c.l.bf16 %v77
    %v334 = vunpack.c.l.bf16 %v78
    %v335 = vunpack.c.l.bf16 %v79
    %v336 = vunpack.c.l.bf16 %v80
    %v337 = vunpack.c.l.bf16 %v81
    %v338 = vunpack.c.l.bf16 %v82
    %v339 = vunpack.c.l.bf16 %v83
    %v340 = vunpack.c.l.bf16 %v84
    %v341 = vunpack.c.l.bf16 %v85
    %v342 = vunpack.c.l.bf16 %v86
    %v343 = vunpack.c.l.bf16 %v87
    %v344 = vunpack.c.l.bf16 %v88
    %v345 = vunpack.c.l.bf16 %v89
    %v346 = vunpack.c.l.bf16 %v90
    %v347 = vunpack.c.l.bf16 %v91
    %v348 = vunpack.c.l.bf16 %v92
    %v349 = vunpack.c.l.bf16 %v93
    %v350 = vunpack.c.l.bf16 %v94
    %v351 = vunpack.c.l.bf16 %v95
    %v352 = vunpack.c.l.bf16 %v96
    %v353 = vunpack.c.l.bf16 %v97
    %v354 = vunpack.c.l.bf16 %v98
    %v355 = vunpack.c.l.bf16 %v99
    %v356 = vunpack.c.l.bf16 %v100
    %v357 = vunpack.c.l.bf16 %v101
    %v358 = vunpack.c.l.bf16 %v102
    %v359 = vunpack.c.l.bf16 %v103
    %v360 = vunpack.c.l.bf16 %v104
    %v361 = vunpack.c.l.bf16 %v105
    %v362 = vunpack.c.l.bf16 %v106
    %v363 = vunpack.c.l.bf16 %v107
    %v364 = vunpack.c.l.bf16 %v108
    %v365 = vunpack.c.l.bf16 %v109
    %v366 = vunpack.c.l.bf16 %v110
    %v367 = vunpack.c.l.bf16 %v111
    %v368 = vunpack.c.l.bf16 %v112
    %v369 = vunpack.c.l.bf16 %v113
    %v370 = vunpack.c.l.bf16 %v114
    %v371 = vunpack.c.l.bf16 %v115
    %v372 = vunpack.c.l.bf16 %v116
    %v373 = vunpack.c.l.bf16 %v117
    %v374 = vunpack.c.l.bf16 %v118
    %v375 = vunpack.c.l.bf16 %v119
    %v376 = vunpack.c.l.bf16 %v120
    %v377 = vunpack.c.l.bf16 %v121
    %v378 = vunpack.c.l.bf16 %v122
    %v379 = vunpack.c.l.bf16 %v123
    %v380 = vunpack.c.l.bf16 %v124
    %v381 = vunpack.c.l.bf16 %v125
    %v382 = vunpack.c.l.bf16 %v126
    %v383 = vunpack.c.l.bf16 %v127
    %v384 = vunpack.c.l.bf16 %v128
    %v385 = vunpack.c.l.bf16 %v129
    %v386 = vunpack.c.l.bf16 %v130
    %v387 = vunpack.c.l.bf16 %v131
    %v388 = vunpack.c.l.bf16 %v132
    %v389 = vunpack.c.l.bf16 %v133
    %v390 = vunpack.c.l.bf16 %v134
    %v391 = vunpack.c.l.bf16 %v135
    %v392 = vunpack.c.l.bf16 %v136
    %v393 = vunpack.c.l.bf16 %v137
    %v394 = vunpack.c.l.bf16 %v138
    %v395 = vunpack.c.l.bf16 %v139
    %v396 = vunpack.c.l.bf16 %v140
    %v397 = vunpack.c.l.bf16 %v141
    %v398 = vunpack.c.l.bf16 %v142
    %v399 = vunpack.c.l.bf16 %v143
    %v400 = vunpack.c.l.bf16 %v144
    %v401 = vunpack.c.l.bf16 %v145
    %v402 = vunpack.c.l.bf16 %v146
    %v403 = vunpack.c.l.bf16 %v147
    %v404 = vunpack.c.l.bf16 %v148
    %v405 = vunpack.c.l.bf16 %v149
    %v406 = vunpack.c.l.bf16 %v150
    %v407 = vunpack.c.l.bf16 %v151
    %v408 = vunpack.c.l.bf16 %v152
    %v409 = vunpack.c.l.bf16 %v153
    %v410 = vunpack.c.l.bf16 %v154
    %v411 = vunpack.c.l.bf16 %v155
    %v412 = vunpack.c.l.bf16 %v156
    %v413 = vunpack.c.l.bf16 %v157
    %v414 = vunpack.c.l.bf16 %v158
    %v415 = vunpack.c.l.bf16 %v159
    %v416 = vunpack.c.l.bf16 %v160
    %v417 = vunpack.c.l.bf16 %v161
    %v418 = vunpack.c.l.bf16 %v162
    %v419 = vunpack.c.l.bf16 %v163
    %v420 = vunpack.c.l.bf16 %v164
    %v421 = vunpack.c.l.bf16 %v165
    %v422 = vunpack.c.l.bf16 %v166
    %v423 = vunpack.c.l.bf16 %v167
    %v424 = vunpack.c.l.bf16 %v168
    %v425 = vunpack.c.l.bf16 %v169
    %v426 = vunpack.c.l.bf16 %v170
    %v427 = vunpack.c.l.bf16 %v171
    %v428 = vunpack.c.l.bf16 %v172
    %v429 = vunpack.c.l.bf16 %v173
    %v430 = vunpack.c.l.bf16 %v174
    %v431 = vunpack.c.l.bf16 %v175
    %v432 = vunpack.c.l.bf16 %v176
    %v433 = vunpack.c.l.bf16 %v177
    %v434 = vunpack.c.l.bf16 %v178
    %v435 = vunpack.c.l.bf16 %v179
    %v436 = vunpack.c.l.bf16 %v180
    %v437 = vunpack.c.l.bf16 %v181
    %v438 = vunpack.c.l.bf16 %v182
    %v439 = vunpack.c.l.bf16 %v183
    %v440 = vunpack.c.l.bf16 %v184
    %v441 = vunpack.c.l.bf16 %v185
    %v442 = vunpack.c.l.bf16 %v186
    %v443 = vunpack.c.l.bf16 %v187
    %v444 = vunpack.c.l.bf16 %v188
    %v445 = vunpack.c.l.bf16 %v189
    %v446 = vunpack.c.l.bf16 %v190
    %v447 = vunpack.c.l.bf16 %v191
    %v448 = vunpack.c.l.bf16 %v192
    %v449 = vunpack.c.l.bf16 %v193
    %v450 = vunpack.c.l.bf16 %v194
    %v451 = vunpack.c.l.bf16 %v195
    %v452 = vunpack.c.l.bf16 %v196
    %v453 = vunpack.c.l.bf16 %v197
    %v454 = vunpack.c.l.bf16 %v198
    %v455 = vunpack.c.l.bf16 %v199
    %v456 = vunpack.c.l.bf16 %v200
    %v457 = vunpack.c.l.bf16 %v201
    %v458 = vunpack.c.l.bf16 %v202
    %v459 = vunpack.c.l.bf16 %v203
    %v460 = vunpack.c.l.bf16 %v204
    %v461 = vunpack.c.l.bf16 %v205
    %v462 = vunpack.c.l.bf16 %v206
    %v463 = vunpack.c.l.bf16 %v207
    %v464 = vunpack.c.l.bf16 %v208
    %v465 = vunpack.c.l.bf16 %v209
    %v466 = vunpack.c.l.bf16 %v210
    %v467 = vunpack.c.l.bf16 %v211
    %v468 = vunpack.c.l.bf16 %v212
    %v469 = vunpack.c.l.bf16 %v213
    %v470 = vunpack.c.l.bf16 %v214
    %v471 = vunpack.c.l.bf16 %v215
    %v472 = vunpack.c.l.bf16 %v216
    %v473 = vunpack.c.l.bf16 %v217
    %v474 = vunpack.c.l.bf16 %v218
    %v475 = vunpack.c.l.bf16 %v219
    %v476 = vunpack.c.l.bf16 %v220
    %v477 = vunpack.c.l.bf16 %v221
    %v478 = vunpack.c.l.bf16 %v222
    %v479 = vunpack.c.l.bf16 %v223
    %v480 = vunpack.c.l.bf16 %v224
    %v481 = vunpack.c.l.bf16 %v225
    %v482 = vunpack.c.l.bf16 %v226
    %v483 = vunpack.c.l.bf16 %v227
    %v484 = vunpack.c.l.bf16 %v228
    %v485 = vunpack.c.l.bf16 %v229
    %v486 = vunpack.c.l.bf16 %v230
    %v487 = vunpack.c.l.bf16 %v231
    %v488 = vunpack.c.l.bf16 %v232
    %v489 = vunpack.c.l.bf16 %v233
    %v490 = vunpack.c.l.bf16 %v234
    %v491 = vunpack.c.l.bf16 %v235
    %v492 = vunpack.c.l.bf16 %v236
    %v493 = vunpack.c.l.bf16 %v237
    %v494 = vunpack.c.l.bf16 %v238
    %v495 = vunpack.c.l.bf16 %v239
    %v496 = vunpack.c.l.bf16 %v240
    %v497 = vunpack.c.l.bf16 %v241
    %v498 = vunpack.c.l.bf16 %v242
    %v499 = vunpack.c.l.bf16 %v243
    %v500 = vunpack.c.l.bf16 %v244
    %v501 = vunpack.c.l.bf16 %v245
    %v502 = vunpack.c.l.bf16 %v246
    %v503 = vunpack.c.l.bf16 %v247
    %v504 = vunpack.c.l.bf16 %v248
    %v505 = vunpack.c.l.bf16 %v249
    %v506 = vunpack.c.l.bf16 %v250
    %v507 = vunpack.c.l.bf16 %v251
    %v508 = vunpack.c.l.bf16 %v252
    %v509 = vunpack.c.l.bf16 %v253
    %v510 = vunpack.c.l.bf16 %v254
    %v511 = vunpack.c.l.bf16 %v255
    %v512 = vunpack.c.l.bf16 %v256
    %v513 = vunpack.c.l.bf16 %v257
    %v514 = vunpack.c.l.bf16 %v258
    %v515 = vunpack.c.l.bf16 %v259
    %v516 = vunpack.c.l.bf16 %v260
    %v517 = vunpack.c.l.bf16 %v261
    %v518 = vunpack.c.l.bf16 %v262
    %v519 = vunpack.c.l.bf16 %v263
    %v520 = vunpack.c.l.bf16 %v264
    %v521 = vunpack.c.l.bf16 %v265
    %v522 = vunpack.c.l.bf16 %v266
    %v523 = vunpack.c.l.bf16 %v267
    %v524 = vunpack.c.l.bf16 %v268
    %v525 = vunpack.c.l.bf16 %v269
    %v526 = vunpack.c.l.bf16 %v270
    %v527 = vunpack.c.l.bf16 %v271
    %v528 = vunpack.c.l.bf16 %v272
    %v529 = vunpack.c.l.bf16 %v273
    %v530 = vunpack.c.l.bf16 %v274
    %v531 = vunpack.c.l.bf16 %v275
    %v532 = vunpack.c.l.bf16 %v276
    %v533 = vunpack.c.l.bf16 %v277
    %v534 = vunpack.c.l.bf16 %v278
    %v535 = vunpack.c.l.bf16 %v279
    %v536 = vmax.f32 %v280, 1e-06
    %v537 = vmax.f32 %v281, 1e-06
    %v538 = vmax.f32 %v282, 1e-06
    %v539 = vmax.f32 %v283, 1e-06
    %v540 = vmax.f32 %v284, 1e-06
    %v541 = vmax.f32 %v285, 1e-06
    %v542 = vmax.f32 %v286, 1e-06
    %v543 = vmax.f32 %v287, 1e-06
    %v544 = vmax.f32 %v288, 1e-06
    %v545 = vmax.f32 %v289, 1e-06
    %v546 = vmax.f32 %v290, 1e-06
    %v547 = vmax.f32 %v291, 1e-06
    %v548 = vmax.f32 %v292, 1e-06
    %v549 = vmax.f32 %v293, 1e-06
    %v550 = vmax.f32 %v294, 1e-06
    %v551 = vmax.f32 %v295, 1e-06
    %v552 = vmax.f32 %v296, 1e-06
    %v553 = vmax.f32 %v297, 1e-06
    %v554 = vmax.f32 %v298, 1e-06
    %v555 = vmax.f32 %v299, 1e-06
    %v556 = vmax.f32 %v300, 1e-06
    %v557 = vmax.f32 %v301, 1e-06
    %v558 = vmax.f32 %v302, 1e-06
    %v559 = vmax.f32 %v303, 1e-06
    %v560 = vmax.f32 %v304, 1e-06
    %v561 = vmax.f32 %v305, 1e-06
    %v562 = vmax.f32 %v306, 1e-06
    %v563 = vmax.f32 %v307, 1e-06
    %v564 = vmax.f32 %v308, 1e-06
    %v565 = vmax.f32 %v309, 1e-06
    %v566 = vmax.f32 %v310, 1e-06
    %v567 = vmax.f32 %v311, 1e-06
    %v568 = vmax.f32 %v312, 1e-06
    %v569 = vmax.f32 %v313, 1e-06
    %v570 = vmax.f32 %v314, 1e-06
    %v571 = vmax.f32 %v315, 1e-06
    %v572 = vmax.f32 %v316, 1e-06
    %v573 = vmax.f32 %v317, 1e-06
    %v574 = vmax.f32 %v318, 1e-06
    %v575 = vmax.f32 %v319, 1e-06
    %v576 = vmax.f32 %v320, 1e-06
    %v577 = vmax.f32 %v321, 1e-06
    %v578 = vmax.f32 %v322, 1e-06
    %v579 = vmax.f32 %v323, 1e-06
    %v580 = vmax.f32 %v324, 1e-06
    %v581 = vmax.f32 %v325, 1e-06
    %v582 = vmax.f32 %v326, 1e-06
    %v583 = vmax.f32 %v327, 1e-06
    %v584 = vmax.f32 %v328, 1e-06
    %v585 = vmax.f32 %v329, 1e-06
    %v586 = vmax.f32 %v330, 1e-06
    %v587 = vmax.f32 %v331, 1e-06
    %v588 = vmax.f32 %v332, 1e-06
    %v589 = vmax.f32 %v333, 1e-06
    %v590 = vmax.f32 %v334, 1e-06
    %v591 = vmax.f32 %v335, 1e-06
    %v592 = vmax.f32 %v336, 1e-06
    %v593 = vmax.f32 %v337, 1e-06
    %v594 = vmax.f32 %v338, 1e-06
    %v595 = vmax.f32 %v339, 1e-06
    %v596 = vmax.f32 %v340, 1e-06
    %v597 = vmax.f32 %v341, 1e-06
    %v598 = vmax.f32 %v342, 1e-06
    %v599 = vmax.f32 %v343, 1e-06
    %v600 = vmax.f32 %v344, 1e-06
    %v601 = vmax.f32 %v345, 1e-06
    %v602 = vmax.f32 %v346, 1e-06
    %v603 = vmax.f32 %v347, 1e-06
    %v604 = vmax.f32 %v348, 1e-06
    %v605 = vmax.f32 %v349, 1e-06
    %v606 = vmax.f32 %v350, 1e-06
    %v607 = vmax.f32 %v351, 1e-06
    %v608 = vmax.f32 %v352, 1e-06
    %v609 = vmax.f32 %v353, 1e-06
    %v610 = vmax.f32 %v354, 1e-06
    %v611 = vmax.f32 %v355, 1e-06
    %v612 = vmax.f32 %v356, 1e-06
    %v613 = vmax.f32 %v357, 1e-06
    %v614 = vmax.f32 %v358, 1e-06
    %v615 = vmax.f32 %v359, 1e-06
    %v616 = vmax.f32 %v360, 1e-06
    %v617 = vmax.f32 %v361, 1e-06
    %v618 = vmax.f32 %v362, 1e-06
    %v619 = vmax.f32 %v363, 1e-06
    %v620 = vmax.f32 %v364, 1e-06
    %v621 = vmax.f32 %v365, 1e-06
    %v622 = vmax.f32 %v366, 1e-06
    %v623 = vmax.f32 %v367, 1e-06
    %v624 = vmax.f32 %v368, 1e-06
    %v625 = vmax.f32 %v369, 1e-06
    %v626 = vmax.f32 %v370, 1e-06
    %v627 = vmax.f32 %v371, 1e-06
    %v628 = vmax.f32 %v372, 1e-06
    %v629 = vmax.f32 %v373, 1e-06
    %v630 = vmax.f32 %v374, 1e-06
    %v631 = vmax.f32 %v375, 1e-06
    %v632 = vmax.f32 %v376, 1e-06
    %v633 = vmax.f32 %v377, 1e-06
    %v634 = vmax.f32 %v378, 1e-06
    %v635 = vmax.f32 %v379, 1e-06
    %v636 = vmax.f32 %v380, 1e-06
    %v637 = vmax.f32 %v381, 1e-06
    %v638 = vmax.f32 %v382, 1e-06
    %v639 = vmax.f32 %v383, 1e-06
    %v640 = vmax.f32 %v384, 1e-06
    %v641 = vmax.f32 %v385, 1e-06
    %v642 = vmax.f32 %v386, 1e-06
    %v643 = vmax.f32 %v387, 1e-06
    %v644 = vmax.f32 %v388, 1e-06
    %v645 = vmax.f32 %v389, 1e-06
    %v646 = vmax.f32 %v390, 1e-06
    %v647 = vmax.f32 %v391, 1e-06
    %v648 = vmax.f32 %v392, 1e-06
    %v649 = vmax.f32 %v393, 1e-06
    %v650 = vmax.f32 %v394, 1e-06
    %v651 = vmax.f32 %v395, 1e-06
    %v652 = vmax.f32 %v396, 1e-06
    %v653 = vmax.f32 %v397, 1e-06
    %v654 = vmax.f32 %v398, 1e-06
    %v655 = vmax.f32 %v399, 1e-06
    %v656 = vmax.f32 %v400, 1e-06
    %v657 = vmax.f32 %v401, 1e-06
    %v658 = vmax.f32 %v402, 1e-06
    %v659 = vmax.f32 %v403, 1e-06
    %v660 = vmax.f32 %v404, 1e-06
    %v661 = vmax.f32 %v405, 1e-06
    %v662 = vmax.f32 %v406, 1e-06
    %v663 = vmax.f32 %v407, 1e-06
    %v664 = vmax.f32 %v408, 1e-06
    %v665 = vmax.f32 %v409, 1e-06
    %v666 = vmax.f32 %v410, 1e-06
    %v667 = vmax.f32 %v411, 1e-06
    %v668 = vmax.f32 %v412, 1e-06
    %v669 = vmax.f32 %v413, 1e-06
    %v670 = vmax.f32 %v414, 1e-06
    %v671 = vmax.f32 %v415, 1e-06
    %v672 = vmax.f32 %v416, 1e-06
    %v673 = vmax.f32 %v417, 1e-06
    %v674 = vmax.f32 %v418, 1e-06
    %v675 = vmax.f32 %v419, 1e-06
    %v676 = vmax.f32 %v420, 1e-06
    %v677 = vmax.f32 %v421, 1e-06
    %v678 = vmax.f32 %v422, 1e-06
    %v679 = vmax.f32 %v423, 1e-06
    %v680 = vmax.f32 %v424, 1e-06
    %v681 = vmax.f32 %v425, 1e-06
    %v682 = vmax.f32 %v426, 1e-06
    %v683 = vmax.f32 %v427, 1e-06
    %v684 = vmax.f32 %v428, 1e-06
    %v685 = vmax.f32 %v429, 1e-06
    %v686 = vmax.f32 %v430, 1e-06
    %v687 = vmax.f32 %v431, 1e-06
    %v688 = vmax.f32 %v432, 1e-06
    %v689 = vmax.f32 %v433, 1e-06
    %v690 = vmax.f32 %v434, 1e-06
    %v691 = vmax.f32 %v435, 1e-06
    %v692 = vmax.f32 %v436, 1e-06
    %v693 = vmax.f32 %v437, 1e-06
    %v694 = vmax.f32 %v438, 1e-06
    %v695 = vmax.f32 %v439, 1e-06
    %v696 = vmax.f32 %v440, 1e-06
    %v697 = vmax.f32 %v441, 1e-06
    %v698 = vmax.f32 %v442, 1e-06
    %v699 = vmax.f32 %v443, 1e-06
    %v700 = vmax.f32 %v444, 1e-06
    %v701 = vmax.f32 %v445, 1e-06
    %v702 = vmax.f32 %v446, 1e-06
    %v703 = vmax.f32 %v447, 1e-06
    %v704 = vmax.f32 %v448, 1e-06
    %v705 = vmax.f32 %v449, 1e-06
    %v706 = vmax.f32 %v450, 1e-06
    %v707 = vmax.f32 %v451, 1e-06
    %v708 = vmax.f32 %v452, 1e-06
    %v709 = vmax.f32 %v453, 1e-06
    %v710 = vmax.f32 %v454, 1e-06
    %v711 = vmax.f32 %v455, 1e-06
    %v712 = vmax.f32 %v456, 1e-06
    %v713 = vmax.f32 %v457, 1e-06
    %v714 = vmax.f32 %v458, 1e-06
    %v715 = vmax.f32 %v459, 1e-06
    %v716 = vmax.f32 %v460, 1e-06
    %v717 = vmax.f32 %v461, 1e-06
    %v718 = vmax.f32 %v462, 1e-06
    %v719 = vmax.f32 %v463, 1e-06
    %v720 = vmax.f32 %v464, 1e-06
    %v721 = vmax.f32 %v465, 1e-06
    %v722 = vmax.f32 %v466, 1e-06
    %v723 = vmax.f32 %v467, 1e-06
    %v724 = vmax.f32 %v468, 1e-06
    %v725 = vmax.f32 %v469, 1e-06
    %v726 = vmax.f32 %v470, 1e-06
    %v727 = vmax.f32 %v471, 1e-06
    %v728 = vmax.f32 %v472, 1e-06
    %v729 = vmax.f32 %v473, 1e-06
    %v730 = vmax.f32 %v474, 1e-06
    %v731 = vmax.f32 %v475, 1e-06
    %v732 = vmax.f32 %v476, 1e-06
    %v733 = vmax.f32 %v477, 1e-06
    %v734 = vmax.f32 %v478, 1e-06
    %v735 = vmax.f32 %v479, 1e-06
    %v736 = vmax.f32 %v480, 1e-06
    %v737 = vmax.f32 %v481, 1e-06
    %v738 = vmax.f32 %v482, 1e-06
    %v739 = vmax.f32 %v483, 1e-06
    %v740 = vmax.f32 %v484, 1e-06
    %v741 = vmax.f32 %v485, 1e-06
    %v742 = vmax.f32 %v486, 1e-06
    %v743 = vmax.f32 %v487, 1e-06
    %v744 = vmax.f32 %v488, 1e-06
    %v745 = vmax.f32 %v489, 1e-06
    %v746 = vmax.f32 %v490, 1e-06
    %v747 = vmax.f32 %v491, 1e-06
    %v748 = vmax.f32 %v492, 1e-06
    %v749 = vmax.f32 %v493, 1e-06
    %v750 = vmax.f32 %v494, 1e-06
    %v751 = vmax.f32 %v495, 1e-06
    %v752 = vmax.f32 %v496, 1e-06
    %v753 = vmax.f32 %v497, 1e-06
    %v754 = vmax.f32 %v498, 1e-06
    %v755 = vmax.f32 %v499, 1e-06
    %v756 = vmax.f32 %v500, 1e-06
    %v757 = vmax.f32 %v501, 1e-06
    %v758 = vmax.f32 %v502, 1e-06
    %v759 = vmax.f32 %v503, 1e-06
    %v760 = vmax.f32 %v504, 1e-06
    %v761 = vmax.f32 %v505, 1e-06
    %v762 = vmax.f32 %v506, 1e-06
    %v763 = vmax.f32 %v507, 1e-06
    %v764 = vmax.f32 %v508, 1e-06
    %v765 = vmax.f32 %v509, 1e-06
    %v766 = vmax.f32 %v510, 1e-06
    %v767 = vmax.f32 %v511, 1e-06
    %v768 = vmax.f32 %v512, 1e-06
    %v769 = vmax.f32 %v513, 1e-06
    %v770 = vmax.f32 %v514, 1e-06
    %v771 = vmax.f32 %v515, 1e-06
    %v772 = vmax.f32 %v516, 1e-06
    %v773 = vmax.f32 %v517, 1e-06
    %v774 = vmax.f32 %v518, 1e-06
    %v775 = vmax.f32 %v519, 1e-06
    %v776 = vmax.f32 %v520, 1e-06
    %v777 = vmax.f32 %v521, 1e-06
    %v778 = vmax.f32 %v522, 1e-06
    %v779 = vmax.f32 %v523, 1e-06
    %v780 = vmax.f32 %v524, 1e-06
    %v781 = vmax.f32 %v525, 1e-06
    %v782 = vmax.f32 %v526, 1e-06
    %v783 = vmax.f32 %v527, 1e-06
    %v784 = vmax.f32 %v528, 1e-06
    %v785 = vmax.f32 %v529, 1e-06
    %v786 = vmax.f32 %v530, 1e-06
    %v787 = vmax.f32 %v531, 1e-06
    %v788 = vmax.f32 %v532, 1e-06
    %v789 = vmax.f32 %v533, 1e-06
    %v790 = vmax.f32 %v534, 1e-06
    %v791 = vmax.f32 %v535, 1e-06
    %v792 = vld [vmem:[#allocation2] sm:$0xff]
    %v793 = vld [vmem:[#allocation2 + $0x8] sm:$0xff]
    %vm794 = vcmask 523264
    %v795 = vsel %vm794, %v536, 0.0
    %796 = vadd.xlane.f32.xlu0 %v795
    %v797 = vpop.xlane.xlu0 %796
    %v798 = vsel %vm794, %v537, 0.0
    %799 = vadd.xlane.f32.xlu0 %v798
    %v800 = vpop.xlane.xlu0 %799
    %v801 = vsel %vm794, %v538, 0.0
    %802 = vadd.xlane.f32.xlu0 %v801
    %v803 = vpop.xlane.xlu0 %802
    %v804 = vsel %vm794, %v539, 0.0
    %805 = vadd.xlane.f32.xlu0 %v804
    %v806 = vpop.xlane.xlu0 %805
    %v807 = vsel %vm794, %v540, 0.0
    %808 = vadd.xlane.f32.xlu0 %v807
    %v809 = vpop.xlane.xlu0 %808
    %v810 = vsel %vm794, %v541, 0.0
    %811 = vadd.xlane.f32.xlu0 %v810
    %v812 = vpop.xlane.xlu0 %811
    %v813 = vsel %vm794, %v542, 0.0
    %814 = vadd.xlane.f32.xlu0 %v813
    %v815 = vpop.xlane.xlu0 %814
    %v816 = vsel %vm794, %v543, 0.0
    %817 = vadd.xlane.f32.xlu0 %v816
    %v818 = vpop.xlane.xlu0 %817
    %v819 = vsel %vm794, %v544, 0.0
    %820 = vadd.xlane.f32.xlu0 %v819
    %v821 = vpop.xlane.xlu0 %820
    %v822 = vsel %vm794, %v545, 0.0
    %823 = vadd.xlane.f32.xlu0 %v822
    %v824 = vpop.xlane.xlu0 %823
    %v825 = vsel %vm794, %v546, 0.0
    %826 = vadd.xlane.f32.xlu0 %v825
    %v827 = vpop.xlane.xlu0 %826
    %v828 = vsel %vm794, %v547, 0.0
    %829 = vadd.xlane.f32.xlu0 %v828
    %v830 = vpop.xlane.xlu0 %829
    %v831 = vsel %vm794, %v548, 0.0
    %832 = vadd.xlane.f32.xlu0 %v831
    %v833 = vpop.xlane.xlu0 %832
    %v834 = vsel %vm794, %v549, 0.0
    %835 = vadd.xlane.f32.xlu0 %v834
    %v836 = vpop.xlane.xlu0 %835
    %v837 = vsel %vm794, %v550, 0.0
    %838 = vadd.xlane.f32.xlu0 %v837
    %v839 = vpop.xlane.xlu0 %838
    %v840 = vsel %vm794, %v551, 0.0
    %841 = vadd.xlane.f32.xlu0 %v840
    %v842 = vpop.xlane.xlu0 %841
    %v843 = vsel %vm794, %v552, 0.0
    %844 = vadd.xlane.f32.xlu0 %v843
    %v845 = vpop.xlane.xlu0 %844
    %v846 = vsel %vm794, %v553, 0.0
    %847 = vadd.xlane.f32.xlu0 %v846
    %v848 = vpop.xlane.xlu0 %847
    %v849 = vsel %vm794, %v554, 0.0
    %850 = vadd.xlane.f32.xlu0 %v849
    %v851 = vpop.xlane.xlu0 %850
    %v852 = vsel %vm794, %v555, 0.0
    %853 = vadd.xlane.f32.xlu0 %v852
    %v854 = vpop.xlane.xlu0 %853
    %v855 = vsel %vm794, %v556, 0.0
    %856 = vadd.xlane.f32.xlu0 %v855
    %v857 = vpop.xlane.xlu0 %856
    %v858 = vsel %vm794, %v557, 0.0
    %859 = vadd.xlane.f32.xlu0 %v858
    %v860 = vpop.xlane.xlu0 %859
    %v861 = vsel %vm794, %v558, 0.0
    %862 = vadd.xlane.f32.xlu0 %v861
    %v863 = vpop.xlane.xlu0 %862
    %v864 = vsel %vm794, %v559, 0.0
    %865 = vadd.xlane.f32.xlu0 %v864
    %v866 = vpop.xlane.xlu0 %865
    %v867 = vsel %vm794, %v560, 0.0
    %868 = vadd.xlane.f32.xlu0 %v867
    %v869 = vpop.xlane.xlu0 %868
    %v870 = vsel %vm794, %v561, 0.0
    %871 = vadd.xlane.f32.xlu0 %v870
    %v872 = vpop.xlane.xlu0 %871
    %v873 = vsel %vm794, %v562, 0.0
    %874 = vadd.xlane.f32.xlu0 %v873
    %v875 = vpop.xlane.xlu0 %874
    %v876 = vsel %vm794, %v563, 0.0
    %877 = vadd.xlane.f32.xlu0 %v876
    %v878 = vpop.xlane.xlu0 %877
    %v879 = vsel %vm794, %v564, 0.0
    %880 = vadd.xlane.f32.xlu0 %v879
    %v881 = vpop.xlane.xlu0 %880
    %v882 = vsel %vm794, %v565, 0.0
    %883 = vadd.xlane.f32.xlu0 %v882
    %v884 = vpop.xlane.xlu0 %883
    %v885 = vsel %vm794, %v566, 0.0
    %886 = vadd.xlane.f32.xlu0 %v885
    %v887 = vpop.xlane.xlu0 %886
    %v888 = vsel %vm794, %v567, 0.0
    %889 = vadd.xlane.f32.xlu0 %v888
    %v890 = vpop.xlane.xlu0 %889
    %v891 = vsel %vm794, %v568, 0.0
    %892 = vadd.xlane.f32.xlu0 %v891
    %v893 = vpop.xlane.xlu0 %892
    %v894 = vsel %vm794, %v569, 0.0
    %895 = vadd.xlane.f32.xlu0 %v894
    %v896 = vpop.xlane.xlu0 %895
    %v897 = vsel %vm794, %v570, 0.0
    %898 = vadd.xlane.f32.xlu0 %v897
    %v899 = vpop.xlane.xlu0 %898
    %v900 = vsel %vm794, %v571, 0.0
    %901 = vadd.xlane.f32.xlu0 %v900
    %v902 = vpop.xlane.xlu0 %901
    %v903 = vsel %vm794, %v572, 0.0
    %904 = vadd.xlane.f32.xlu0 %v903
    %v905 = vpop.xlane.xlu0 %904
    %v906 = vsel %vm794, %v573, 0.0
    %907 = vadd.xlane.f32.xlu0 %v906
    %v908 = vpop.xlane.xlu0 %907
    %v909 = vsel %vm794, %v574, 0.0
    %910 = vadd.xlane.f32.xlu0 %v909
    %v911 = vpop.xlane.xlu0 %910
    %v912 = vsel %vm794, %v575, 0.0
    %913 = vadd.xlane.f32.xlu0 %v912
    %v914 = vpop.xlane.xlu0 %913
    %v915 = vsel %vm794, %v576, 0.0
    %916 = vadd.xlane.f32.xlu0 %v915
    %v917 = vpop.xlane.xlu0 %916
    %v918 = vsel %vm794, %v577, 0.0
    %919 = vadd.xlane.f32.xlu0 %v918
    %v920 = vpop.xlane.xlu0 %919
    %v921 = vsel %vm794, %v578, 0.0
    %922 = vadd.xlane.f32.xlu0 %v921
    %v923 = vpop.xlane.xlu0 %922
    %v924 = vsel %vm794, %v579, 0.0
    %925 = vadd.xlane.f32.xlu0 %v924
    %v926 = vpop.xlane.xlu0 %925
    %v927 = vsel %vm794, %v580, 0.0
    %928 = vadd.xlane.f32.xlu0 %v927
    %v929 = vpop.xlane.xlu0 %928
    %v930 = vsel %vm794, %v581, 0.0
    %931 = vadd.xlane.f32.xlu0 %v930
    %v932 = vpop.xlane.xlu0 %931
    %v933 = vsel %vm794, %v582, 0.0
    %934 = vadd.xlane.f32.xlu0 %v933
    %v935 = vpop.xlane.xlu0 %934
    %v936 = vsel %vm794, %v583, 0.0
    %937 = vadd.xlane.f32.xlu0 %v936
    %v938 = vpop.xlane.xlu0 %937
    %v939 = vsel %vm794, %v584, 0.0
    %940 = vadd.xlane.f32.xlu0 %v939
    %v941 = vpop.xlane.xlu0 %940
    %v942 = vsel %vm794, %v585, 0.0
    %943 = vadd.xlane.f32.xlu0 %v942
    %v944 = vpop.xlane.xlu0 %943
    %v945 = vsel %vm794, %v586, 0.0
    %946 = vadd.xlane.f32.xlu0 %v945
    %v947 = vpop.xlane.xlu0 %946
    %v948 = vsel %vm794, %v587, 0.0
    %949 = vadd.xlane.f32.xlu0 %v948
    %v950 = vpop.xlane.xlu0 %949
    %v951 = vsel %vm794, %v588, 0.0
    %952 = vadd.xlane.f32.xlu0 %v951
    %v953 = vpop.xlane.xlu0 %952
    %v954 = vsel %vm794, %v589, 0.0
    %955 = vadd.xlane.f32.xlu0 %v954
    %v956 = vpop.xlane.xlu0 %955
    %v957 = vsel %vm794, %v590, 0.0
    %958 = vadd.xlane.f32.xlu0 %v957
    %v959 = vpop.xlane.xlu0 %958
    %v960 = vsel %vm794, %v591, 0.0
    %961 = vadd.xlane.f32.xlu0 %v960
    %v962 = vpop.xlane.xlu0 %961
    %v963 = vsel %vm794, %v592, 0.0
    %964 = vadd.xlane.f32.xlu0 %v963
    %v965 = vpop.xlane.xlu0 %964
    %v966 = vsel %vm794, %v593, 0.0
    %967 = vadd.xlane.f32.xlu0 %v966
    %v968 = vpop.xlane.xlu0 %967
    %v969 = vsel %vm794, %v594, 0.0
    %970 = vadd.xlane.f32.xlu0 %v969
    %v971 = vpop.xlane.xlu0 %970
    %v972 = vsel %vm794, %v595, 0.0
    %973 = vadd.xlane.f32.xlu0 %v972
    %v974 = vpop.xlane.xlu0 %973
    %v975 = vsel %vm794, %v596, 0.0
    %976 = vadd.xlane.f32.xlu0 %v975
    %v977 = vpop.xlane.xlu0 %976
    %v978 = vsel %vm794, %v597, 0.0
    %979 = vadd.xlane.f32.xlu0 %v978
    %v980 = vpop.xlane.xlu0 %979
    %v981 = vsel %vm794, %v598, 0.0
    %982 = vadd.xlane.f32.xlu0 %v981
    %v983 = vpop.xlane.xlu0 %982
    %v984 = vsel %vm794, %v599, 0.0
    %985 = vadd.xlane.f32.xlu0 %v984
    %v986 = vpop.xlane.xlu0 %985
    %v987 = vsel %vm794, %v600, 0.0
    %988 = vadd.xlane.f32.xlu0 %v987
    %v989 = vpop.xlane.xlu0 %988
    %v990 = vsel %vm794, %v601, 0.0
    %991 = vadd.xlane.f32.xlu0 %v990
    %v992 = vpop.xlane.xlu0 %991
    %v993 = vsel %vm794, %v602, 0.0
    %994 = vadd.xlane.f32.xlu0 %v993
    %v995 = vpop.xlane.xlu0 %994
    %v996 = vsel %vm794, %v603, 0.0
    %997 = vadd.xlane.f32.xlu0 %v996
    %v998 = vpop.xlane.xlu0 %997
    %v999 = vsel %vm794, %v604, 0.0
    %1000 = vadd.xlane.f32.xlu0 %v999
    %v1001 = vpop.xlane.xlu0 %1000
    %v1002 = vsel %vm794, %v605, 0.0
    %1003 = vadd.xlane.f32.xlu0 %v1002
    %v1004 = vpop.xlane.xlu0 %1003
    %v1005 = vsel %vm794, %v606, 0.0
    %1006 = vadd.xlane.f32.xlu0 %v1005
    %v1007 = vpop.xlane.xlu0 %1006
    %v1008 = vsel %vm794, %v607, 0.0
    %1009 = vadd.xlane.f32.xlu0 %v1008
    %v1010 = vpop.xlane.xlu0 %1009
    %v1011 = vsel %vm794, %v608, 0.0
    %1012 = vadd.xlane.f32.xlu0 %v1011
    %v1013 = vpop.xlane.xlu0 %1012
    %v1014 = vsel %vm794, %v609, 0.0
    %1015 = vadd.xlane.f32.xlu0 %v1014
    %v1016 = vpop.xlane.xlu0 %1015
    %v1017 = vsel %vm794, %v610, 0.0
    %1018 = vadd.xlane.f32.xlu0 %v1017
    %v1019 = vpop.xlane.xlu0 %1018
    %v1020 = vsel %vm794, %v611, 0.0
    %1021 = vadd.xlane.f32.xlu0 %v1020
    %v1022 = vpop.xlane.xlu0 %1021
    %v1023 = vsel %vm794, %v612, 0.0
    %1024 = vadd.xlane.f32.xlu0 %v1023
    %v1025 = vpop.xlane.xlu0 %1024
    %v1026 = vsel %vm794, %v613, 0.0
    %1027 = vadd.xlane.f32.xlu0 %v1026
    %v1028 = vpop.xlane.xlu0 %1027
    %v1029 = vsel %vm794, %v614, 0.0
    %1030 = vadd.xlane.f32.xlu0 %v1029
    %v1031 = vpop.xlane.xlu0 %1030
    %v1032 = vsel %vm794, %v615, 0.0
    %1033 = vadd.xlane.f32.xlu0 %v1032
    %v1034 = vpop.xlane.xlu0 %1033
    %v1035 = vsel %vm794, %v616, 0.0
    %1036 = vadd.xlane.f32.xlu0 %v1035
    %v1037 = vpop.xlane.xlu0 %1036
    %v1038 = vsel %vm794, %v617, 0.0
    %1039 = vadd.xlane.f32.xlu0 %v1038
    %v1040 = vpop.xlane.xlu0 %1039
    %v1041 = vsel %vm794, %v618, 0.0
    %1042 = vadd.xlane.f32.xlu0 %v1041
    %v1043 = vpop.xlane.xlu0 %1042
    %v1044 = vsel %vm794, %v619, 0.0
    %1045 = vadd.xlane.f32.xlu0 %v1044
    %v1046 = vpop.xlane.xlu0 %1045
    %v1047 = vsel %vm794, %v620, 0.0
    %1048 = vadd.xlane.f32.xlu0 %v1047
    %v1049 = vpop.xlane.xlu0 %1048
    %v1050 = vsel %vm794, %v621, 0.0
    %1051 = vadd.xlane.f32.xlu0 %v1050
    %v1052 = vpop.xlane.xlu0 %1051
    %v1053 = vsel %vm794, %v622, 0.0
    %1054 = vadd.xlane.f32.xlu0 %v1053
    %v1055 = vpop.xlane.xlu0 %1054
    %v1056 = vsel %vm794, %v623, 0.0
    %1057 = vadd.xlane.f32.xlu0 %v1056
    %v1058 = vpop.xlane.xlu0 %1057
    %v1059 = vsel %vm794, %v624, 0.0
    %1060 = vadd.xlane.f32.xlu0 %v1059
    %v1061 = vpop.xlane.xlu0 %1060
    %v1062 = vsel %vm794, %v625, 0.0
    %1063 = vadd.xlane.f32.xlu0 %v1062
    %v1064 = vpop.xlane.xlu0 %1063
    %v1065 = vsel %vm794, %v626, 0.0
    %1066 = vadd.xlane.f32.xlu0 %v1065
    %v1067 = vpop.xlane.xlu0 %1066
    %v1068 = vsel %vm794, %v627, 0.0
    %1069 = vadd.xlane.f32.xlu0 %v1068
    %v1070 = vpop.xlane.xlu0 %1069
    %v1071 = vsel %vm794, %v628, 0.0
    %1072 = vadd.xlane.f32.xlu0 %v1071
    %v1073 = vpop.xlane.xlu0 %1072
    %v1074 = vsel %vm794, %v629, 0.0
    %1075 = vadd.xlane.f32.xlu0 %v1074
    %v1076 = vpop.xlane.xlu0 %1075
    %v1077 = vsel %vm794, %v630, 0.0
    %1078 = vadd.xlane.f32.xlu0 %v1077
    %v1079 = vpop.xlane.xlu0 %1078
    %v1080 = vsel %vm794, %v631, 0.0
    %1081 = vadd.xlane.f32.xlu0 %v1080
    %v1082 = vpop.xlane.xlu0 %1081
    %v1083 = vsel %vm794, %v632, 0.0
    %1084 = vadd.xlane.f32.xlu0 %v1083
    %v1085 = vpop.xlane.xlu0 %1084
    %v1086 = vsel %vm794, %v633, 0.0
    %1087 = vadd.xlane.f32.xlu0 %v1086
    %v1088 = vpop.xlane.xlu0 %1087
    %v1089 = vsel %vm794, %v634, 0.0
    %1090 = vadd.xlane.f32.xlu0 %v1089
    %v1091 = vpop.xlane.xlu0 %1090
    %v1092 = vsel %vm794, %v635, 0.0
    %1093 = vadd.xlane.f32.xlu0 %v1092
    %v1094 = vpop.xlane.xlu0 %1093
    %v1095 = vsel %vm794, %v636, 0.0
    %1096 = vadd.xlane.f32.xlu0 %v1095
    %v1097 = vpop.xlane.xlu0 %1096
    %v1098 = vsel %vm794, %v637, 0.0
    %1099 = vadd.xlane.f32.xlu0 %v1098
    %v1100 = vpop.xlane.xlu0 %1099
    %v1101 = vsel %vm794, %v638, 0.0
    %1102 = vadd.xlane.f32.xlu0 %v1101
    %v1103 = vpop.xlane.xlu0 %1102
    %v1104 = vsel %vm794, %v639, 0.0
    %1105 = vadd.xlane.f32.xlu0 %v1104
    %v1106 = vpop.xlane.xlu0 %1105
    %v1107 = vsel %vm794, %v640, 0.0
    %1108 = vadd.xlane.f32.xlu0 %v1107
    %v1109 = vpop.xlane.xlu0 %1108
    %v1110 = vsel %vm794, %v641, 0.0
    %1111 = vadd.xlane.f32.xlu0 %v1110
    %v1112 = vpop.xlane.xlu0 %1111
    %v1113 = vsel %vm794, %v642, 0.0
    %1114 = vadd.xlane.f32.xlu0 %v1113
    %v1115 = vpop.xlane.xlu0 %1114
    %v1116 = vsel %vm794, %v643, 0.0
    %1117 = vadd.xlane.f32.xlu0 %v1116
    %v1118 = vpop.xlane.xlu0 %1117
    %v1119 = vsel %vm794, %v644, 0.0
    %1120 = vadd.xlane.f32.xlu0 %v1119
    %v1121 = vpop.xlane.xlu0 %1120
    %v1122 = vsel %vm794, %v645, 0.0
    %1123 = vadd.xlane.f32.xlu0 %v1122
    %v1124 = vpop.xlane.xlu0 %1123
    %v1125 = vsel %vm794, %v646, 0.0
    %1126 = vadd.xlane.f32.xlu0 %v1125
    %v1127 = vpop.xlane.xlu0 %1126
    %v1128 = vsel %vm794, %v647, 0.0
    %1129 = vadd.xlane.f32.xlu0 %v1128
    %v1130 = vpop.xlane.xlu0 %1129
    %v1131 = vsel %vm794, %v648, 0.0
    %1132 = vadd.xlane.f32.xlu0 %v1131
    %v1133 = vpop.xlane.xlu0 %1132
    %v1134 = vsel %vm794, %v649, 0.0
    %1135 = vadd.xlane.f32.xlu0 %v1134
    %v1136 = vpop.xlane.xlu0 %1135
    %v1137 = vsel %vm794, %v650, 0.0
    %1138 = vadd.xlane.f32.xlu0 %v1137
    %v1139 = vpop.xlane.xlu0 %1138
    %v1140 = vsel %vm794, %v651, 0.0
    %1141 = vadd.xlane.f32.xlu0 %v1140
    %v1142 = vpop.xlane.xlu0 %1141
    %v1143 = vsel %vm794, %v652, 0.0
    %1144 = vadd.xlane.f32.xlu0 %v1143
    %v1145 = vpop.xlane.xlu0 %1144
    %v1146 = vsel %vm794, %v653, 0.0
    %1147 = vadd.xlane.f32.xlu0 %v1146
    %v1148 = vpop.xlane.xlu0 %1147
    %v1149 = vsel %vm794, %v654, 0.0
    %1150 = vadd.xlane.f32.xlu0 %v1149
    %v1151 = vpop.xlane.xlu0 %1150
    %v1152 = vsel %vm794, %v655, 0.0
    %1153 = vadd.xlane.f32.xlu0 %v1152
    %v1154 = vpop.xlane.xlu0 %1153
    %v1155 = vsel %vm794, %v656, 0.0
    %1156 = vadd.xlane.f32.xlu0 %v1155
    %v1157 = vpop.xlane.xlu0 %1156
    %v1158 = vsel %vm794, %v657, 0.0
    %1159 = vadd.xlane.f32.xlu0 %v1158
    %v1160 = vpop.xlane.xlu0 %1159
    %v1161 = vsel %vm794, %v658, 0.0
    %1162 = vadd.xlane.f32.xlu0 %v1161
    %v1163 = vpop.xlane.xlu0 %1162
    %v1164 = vsel %vm794, %v659, 0.0
    %1165 = vadd.xlane.f32.xlu0 %v1164
    %v1166 = vpop.xlane.xlu0 %1165
    %v1167 = vsel %vm794, %v660, 0.0
    %1168 = vadd.xlane.f32.xlu0 %v1167
    %v1169 = vpop.xlane.xlu0 %1168
    %v1170 = vsel %vm794, %v661, 0.0
    %1171 = vadd.xlane.f32.xlu0 %v1170
    %v1172 = vpop.xlane.xlu0 %1171
    %v1173 = vsel %vm794, %v662, 0.0
    %1174 = vadd.xlane.f32.xlu0 %v1173
    %v1175 = vpop.xlane.xlu0 %1174
    %v1176 = vsel %vm794, %v663, 0.0
    %1177 = vadd.xlane.f32.xlu0 %v1176
    %v1178 = vpop.xlane.xlu0 %1177
    %v1179 = vsel %vm794, %v664, 0.0
    %1180 = vadd.xlane.f32.xlu0 %v1179
    %v1181 = vpop.xlane.xlu0 %1180
    %v1182 = vsel %vm794, %v665, 0.0
    %1183 = vadd.xlane.f32.xlu0 %v1182
    %v1184 = vpop.xlane.xlu0 %1183
    %v1185 = vsel %vm794, %v666, 0.0
    %1186 = vadd.xlane.f32.xlu0 %v1185
    %v1187 = vpop.xlane.xlu0 %1186
    %v1188 = vsel %vm794, %v667, 0.0
    %1189 = vadd.xlane.f32.xlu0 %v1188
    %v1190 = vpop.xlane.xlu0 %1189
    %v1191 = vsel %vm794, %v668, 0.0
    %1192 = vadd.xlane.f32.xlu0 %v1191
    %v1193 = vpop.xlane.xlu0 %1192
    %v1194 = vsel %vm794, %v669, 0.0
    %1195 = vadd.xlane.f32.xlu0 %v1194
    %v1196 = vpop.xlane.xlu0 %1195
    %v1197 = vsel %vm794, %v670, 0.0
    %1198 = vadd.xlane.f32.xlu0 %v1197
    %v1199 = vpop.xlane.xlu0 %1198
    %v1200 = vsel %vm794, %v671, 0.0
    %1201 = vadd.xlane.f32.xlu0 %v1200
    %v1202 = vpop.xlane.xlu0 %1201
    %v1203 = vsel %vm794, %v672, 0.0
    %1204 = vadd.xlane.f32.xlu0 %v1203
    %v1205 = vpop.xlane.xlu0 %1204
    %v1206 = vsel %vm794, %v673, 0.0
    %1207 = vadd.xlane.f32.xlu0 %v1206
    %v1208 = vpop.xlane.xlu0 %1207
    %v1209 = vsel %vm794, %v674, 0.0
    %1210 = vadd.xlane.f32.xlu0 %v1209
    %v1211 = vpop.xlane.xlu0 %1210
    %v1212 = vsel %vm794, %v675, 0.0
    %1213 = vadd.xlane.f32.xlu0 %v1212
    %v1214 = vpop.xlane.xlu0 %1213
    %v1215 = vsel %vm794, %v676, 0.0
    %1216 = vadd.xlane.f32.xlu0 %v1215
    %v1217 = vpop.xlane.xlu0 %1216
    %v1218 = vsel %vm794, %v677, 0.0
    %1219 = vadd.xlane.f32.xlu0 %v1218
    %v1220 = vpop.xlane.xlu0 %1219
    %v1221 = vsel %vm794, %v678, 0.0
    %1222 = vadd.xlane.f32.xlu0 %v1221
    %v1223 = vpop.xlane.xlu0 %1222
    %v1224 = vsel %vm794, %v679, 0.0
    %1225 = vadd.xlane.f32.xlu0 %v1224
    %v1226 = vpop.xlane.xlu0 %1225
    %v1227 = vsel %vm794, %v680, 0.0
    %1228 = vadd.xlane.f32.xlu0 %v1227
    %v1229 = vpop.xlane.xlu0 %1228
    %v1230 = vsel %vm794, %v681, 0.0
    %1231 = vadd.xlane.f32.xlu0 %v1230
    %v1232 = vpop.xlane.xlu0 %1231
    %v1233 = vsel %vm794, %v682, 0.0
    %1234 = vadd.xlane.f32.xlu0 %v1233
    %v1235 = vpop.xlane.xlu0 %1234
    %v1236 = vsel %vm794, %v683, 0.0
    %1237 = vadd.xlane.f32.xlu0 %v1236
    %v1238 = vpop.xlane.xlu0 %1237
    %v1239 = vsel %vm794, %v684, 0.0
    %1240 = vadd.xlane.f32.xlu0 %v1239
    %v1241 = vpop.xlane.xlu0 %1240
    %v1242 = vsel %vm794, %v685, 0.0
    %1243 = vadd.xlane.f32.xlu0 %v1242
    %v1244 = vpop.xlane.xlu0 %1243
    %v1245 = vsel %vm794, %v686, 0.0
    %1246 = vadd.xlane.f32.xlu0 %v1245
    %v1247 = vpop.xlane.xlu0 %1246
    %v1248 = vsel %vm794, %v687, 0.0
    %1249 = vadd.xlane.f32.xlu0 %v1248
    %v1250 = vpop.xlane.xlu0 %1249
    %v1251 = vsel %vm794, %v688, 0.0
    %1252 = vadd.xlane.f32.xlu0 %v1251
    %v1253 = vpop.xlane.xlu0 %1252
    %v1254 = vsel %vm794, %v689, 0.0
    %1255 = vadd.xlane.f32.xlu0 %v1254
    %v1256 = vpop.xlane.xlu0 %1255
    %v1257 = vsel %vm794, %v690, 0.0
    %1258 = vadd.xlane.f32.xlu0 %v1257
    %v1259 = vpop.xlane.xlu0 %1258
    %v1260 = vsel %vm794, %v691, 0.0
    %1261 = vadd.xlane.f32.xlu0 %v1260
    %v1262 = vpop.xlane.xlu0 %1261
    %v1263 = vsel %vm794, %v692, 0.0
    %1264 = vadd.xlane.f32.xlu0 %v1263
    %v1265 = vpop.xlane.xlu0 %1264
    %v1266 = vsel %vm794, %v693, 0.0
    %1267 = vadd.xlane.f32.xlu0 %v1266
    %v1268 = vpop.xlane.xlu0 %1267
    %v1269 = vsel %vm794, %v694, 0.0
    %1270 = vadd.xlane.f32.xlu0 %v1269
    %v1271 = vpop.xlane.xlu0 %1270
    %v1272 = vsel %vm794, %v695, 0.0
    %1273 = vadd.xlane.f32.xlu0 %v1272
    %v1274 = vpop.xlane.xlu0 %1273
    %v1275 = vsel %vm794, %v696, 0.0
    %1276 = vadd.xlane.f32.xlu0 %v1275
    %v1277 = vpop.xlane.xlu0 %1276
    %v1278 = vsel %vm794, %v697, 0.0
    %1279 = vadd.xlane.f32.xlu0 %v1278
    %v1280 = vpop.xlane.xlu0 %1279
    %v1281 = vsel %vm794, %v698, 0.0
    %1282 = vadd.xlane.f32.xlu0 %v1281
    %v1283 = vpop.xlane.xlu0 %1282
    %v1284 = vsel %vm794, %v699, 0.0
    %1285 = vadd.xlane.f32.xlu0 %v1284
    %v1286 = vpop.xlane.xlu0 %1285
    %v1287 = vsel %vm794, %v700, 0.0
    %1288 = vadd.xlane.f32.xlu0 %v1287
    %v1289 = vpop.xlane.xlu0 %1288
    %v1290 = vsel %vm794, %v701, 0.0
    %1291 = vadd.xlane.f32.xlu0 %v1290
    %v1292 = vpop.xlane.xlu0 %1291
    %v1293 = vsel %vm794, %v702, 0.0
    %1294 = vadd.xlane.f32.xlu0 %v1293
    %v1295 = vpop.xlane.xlu0 %1294
    %v1296 = vsel %vm794, %v703, 0.0
    %1297 = vadd.xlane.f32.xlu0 %v1296
    %v1298 = vpop.xlane.xlu0 %1297
    %v1299 = vsel %vm794, %v704, 0.0
    %1300 = vadd.xlane.f32.xlu0 %v1299
    %v1301 = vpop.xlane.xlu0 %1300
    %v1302 = vsel %vm794, %v705, 0.0
    %1303 = vadd.xlane.f32.xlu0 %v1302
    %v1304 = vpop.xlane.xlu0 %1303
    %v1305 = vsel %vm794, %v706, 0.0
    %1306 = vadd.xlane.f32.xlu0 %v1305
    %v1307 = vpop.xlane.xlu0 %1306
    %v1308 = vsel %vm794, %v707, 0.0
    %1309 = vadd.xlane.f32.xlu0 %v1308
    %v1310 = vpop.xlane.xlu0 %1309
    %v1311 = vsel %vm794, %v708, 0.0
    %1312 = vadd.xlane.f32.xlu0 %v1311
    %v1313 = vpop.xlane.xlu0 %1312
    %v1314 = vsel %vm794, %v709, 0.0
    %1315 = vadd.xlane.f32.xlu0 %v1314
    %v1316 = vpop.xlane.xlu0 %1315
    %v1317 = vsel %vm794, %v710, 0.0
    %1318 = vadd.xlane.f32.xlu0 %v1317
    %v1319 = vpop.xlane.xlu0 %1318
    %v1320 = vsel %vm794, %v711, 0.0
    %1321 = vadd.xlane.f32.xlu0 %v1320
    %v1322 = vpop.xlane.xlu0 %1321
    %v1323 = vsel %vm794, %v712, 0.0
    %1324 = vadd.xlane.f32.xlu0 %v1323
    %v1325 = vpop.xlane.xlu0 %1324
    %v1326 = vsel %vm794, %v713, 0.0
    %1327 = vadd.xlane.f32.xlu0 %v1326
    %v1328 = vpop.xlane.xlu0 %1327
    %v1329 = vsel %vm794, %v714, 0.0
    %1330 = vadd.xlane.f32.xlu0 %v1329
    %v1331 = vpop.xlane.xlu0 %1330
    %v1332 = vsel %vm794, %v715, 0.0
    %1333 = vadd.xlane.f32.xlu0 %v1332
    %v1334 = vpop.xlane.xlu0 %1333
    %v1335 = vsel %vm794, %v716, 0.0
    %1336 = vadd.xlane.f32.xlu0 %v1335
    %v1337 = vpop.xlane.xlu0 %1336
    %v1338 = vsel %vm794, %v717, 0.0
    %1339 = vadd.xlane.f32.xlu0 %v1338
    %v1340 = vpop.xlane.xlu0 %1339
    %v1341 = vsel %vm794, %v718, 0.0
    %1342 = vadd.xlane.f32.xlu0 %v1341
    %v1343 = vpop.xlane.xlu0 %1342
    %v1344 = vsel %vm794, %v719, 0.0
    %1345 = vadd.xlane.f32.xlu0 %v1344
    %v1346 = vpop.xlane.xlu0 %1345
    %v1347 = vsel %vm794, %v720, 0.0
    %1348 = vadd.xlane.f32.xlu0 %v1347
    %v1349 = vpop.xlane.xlu0 %1348
    %v1350 = vsel %vm794, %v721, 0.0
    %1351 = vadd.xlane.f32.xlu0 %v1350
    %v1352 = vpop.xlane.xlu0 %1351
    %v1353 = vsel %vm794, %v722, 0.0
    %1354 = vadd.xlane.f32.xlu0 %v1353
    %v1355 = vpop.xlane.xlu0 %1354
    %v1356 = vsel %vm794, %v723, 0.0
    %1357 = vadd.xlane.f32.xlu0 %v1356
    %v1358 = vpop.xlane.xlu0 %1357
    %v1359 = vsel %vm794, %v724, 0.0
    %1360 = vadd.xlane.f32.xlu0 %v1359
    %v1361 = vpop.xlane.xlu0 %1360
    %v1362 = vsel %vm794, %v725, 0.0
    %1363 = vadd.xlane.f32.xlu0 %v1362
    %v1364 = vpop.xlane.xlu0 %1363
    %v1365 = vsel %vm794, %v726, 0.0
    %1366 = vadd.xlane.f32.xlu0 %v1365
    %v1367 = vpop.xlane.xlu0 %1366
    %v1368 = vsel %vm794, %v727, 0.0
    %1369 = vadd.xlane.f32.xlu0 %v1368
    %v1370 = vpop.xlane.xlu0 %1369
    %v1371 = vsel %vm794, %v728, 0.0
    %1372 = vadd.xlane.f32.xlu0 %v1371
    %v1373 = vpop.xlane.xlu0 %1372
    %v1374 = vsel %vm794, %v729, 0.0
    %1375 = vadd.xlane.f32.xlu0 %v1374
    %v1376 = vpop.xlane.xlu0 %1375
    %v1377 = vsel %vm794, %v730, 0.0
    %1378 = vadd.xlane.f32.xlu0 %v1377
    %v1379 = vpop.xlane.xlu0 %1378
    %v1380 = vsel %vm794, %v731, 0.0
    %1381 = vadd.xlane.f32.xlu0 %v1380
    %v1382 = vpop.xlane.xlu0 %1381
    %v1383 = vsel %vm794, %v732, 0.0
    %1384 = vadd.xlane.f32.xlu0 %v1383
    %v1385 = vpop.xlane.xlu0 %1384
    %v1386 = vsel %vm794, %v733, 0.0
    %1387 = vadd.xlane.f32.xlu0 %v1386
    %v1388 = vpop.xlane.xlu0 %1387
    %v1389 = vsel %vm794, %v734, 0.0
    %1390 = vadd.xlane.f32.xlu0 %v1389
    %v1391 = vpop.xlane.xlu0 %1390
    %v1392 = vsel %vm794, %v735, 0.0
    %1393 = vadd.xlane.f32.xlu0 %v1392
    %v1394 = vpop.xlane.xlu0 %1393
    %v1395 = vsel %vm794, %v736, 0.0
    %1396 = vadd.xlane.f32.xlu0 %v1395
    %v1397 = vpop.xlane.xlu0 %1396
    %v1398 = vsel %vm794, %v737, 0.0
    %1399 = vadd.xlane.f32.xlu0 %v1398
    %v1400 = vpop.xlane.xlu0 %1399
    %v1401 = vsel %vm794, %v738, 0.0
    %1402 = vadd.xlane.f32.xlu0 %v1401
    %v1403 = vpop.xlane.xlu0 %1402
    %v1404 = vsel %vm794, %v739, 0.0
    %1405 = vadd.xlane.f32.xlu0 %v1404
    %v1406 = vpop.xlane.xlu0 %1405
    %v1407 = vsel %vm794, %v740, 0.0
    %1408 = vadd.xlane.f32.xlu0 %v1407
    %v1409 = vpop.xlane.xlu0 %1408
    %v1410 = vsel %vm794, %v741, 0.0
    %1411 = vadd.xlane.f32.xlu0 %v1410
    %v1412 = vpop.xlane.xlu0 %1411
    %v1413 = vsel %vm794, %v742, 0.0
    %1414 = vadd.xlane.f32.xlu0 %v1413
    %v1415 = vpop.xlane.xlu0 %1414
    %v1416 = vsel %vm794, %v743, 0.0
    %1417 = vadd.xlane.f32.xlu0 %v1416
    %v1418 = vpop.xlane.xlu0 %1417
    %v1419 = vsel %vm794, %v744, 0.0
    %1420 = vadd.xlane.f32.xlu0 %v1419
    %v1421 = vpop.xlane.xlu0 %1420
    %v1422 = vsel %vm794, %v745, 0.0
    %1423 = vadd.xlane.f32.xlu0 %v1422
    %v1424 = vpop.xlane.xlu0 %1423
    %v1425 = vsel %vm794, %v746, 0.0
    %1426 = vadd.xlane.f32.xlu0 %v1425
    %v1427 = vpop.xlane.xlu0 %1426
    %v1428 = vsel %vm794, %v747, 0.0
    %1429 = vadd.xlane.f32.xlu0 %v1428
    %v1430 = vpop.xlane.xlu0 %1429
    %v1431 = vsel %vm794, %v748, 0.0
    %1432 = vadd.xlane.f32.xlu0 %v1431
    %v1433 = vpop.xlane.xlu0 %1432
    %v1434 = vsel %vm794, %v749, 0.0
    %1435 = vadd.xlane.f32.xlu0 %v1434
    %v1436 = vpop.xlane.xlu0 %1435
    %v1437 = vsel %vm794, %v750, 0.0
    %1438 = vadd.xlane.f32.xlu0 %v1437
    %v1439 = vpop.xlane.xlu0 %1438
    %v1440 = vsel %vm794, %v751, 0.0
    %1441 = vadd.xlane.f32.xlu0 %v1440
    %v1442 = vpop.xlane.xlu0 %1441
    %v1443 = vsel %vm794, %v752, 0.0
    %1444 = vadd.xlane.f32.xlu0 %v1443
    %v1445 = vpop.xlane.xlu0 %1444
    %v1446 = vsel %vm794, %v753, 0.0
    %1447 = vadd.xlane.f32.xlu0 %v1446
    %v1448 = vpop.xlane.xlu0 %1447
    %v1449 = vsel %vm794, %v754, 0.0
    %1450 = vadd.xlane.f32.xlu0 %v1449
    %v1451 = vpop.xlane.xlu0 %1450
    %v1452 = vsel %vm794, %v755, 0.0
    %1453 = vadd.xlane.f32.xlu0 %v1452
    %v1454 = vpop.xlane.xlu0 %1453
    %v1455 = vsel %vm794, %v756, 0.0
    %1456 = vadd.xlane.f32.xlu0 %v1455
    %v1457 = vpop.xlane.xlu0 %1456
    %v1458 = vsel %vm794, %v757, 0.0
    %1459 = vadd.xlane.f32.xlu0 %v1458
    %v1460 = vpop.xlane.xlu0 %1459
    %v1461 = vsel %vm794, %v758, 0.0
    %1462 = vadd.xlane.f32.xlu0 %v1461
    %v1463 = vpop.xlane.xlu0 %1462
    %v1464 = vsel %vm794, %v759, 0.0
    %1465 = vadd.xlane.f32.xlu0 %v1464
    %v1466 = vpop.xlane.xlu0 %1465
    %v1467 = vsel %vm794, %v760, 0.0
    %1468 = vadd.xlane.f32.xlu0 %v1467
    %v1469 = vpop.xlane.xlu0 %1468
    %v1470 = vsel %vm794, %v761, 0.0
    %1471 = vadd.xlane.f32.xlu0 %v1470
    %v1472 = vpop.xlane.xlu0 %1471
    %v1473 = vsel %vm794, %v762, 0.0
    %1474 = vadd.xlane.f32.xlu0 %v1473
    %v1475 = vpop.xlane.xlu0 %1474
    %v1476 = vsel %vm794, %v763, 0.0
    %1477 = vadd.xlane.f32.xlu0 %v1476
    %v1478 = vpop.xlane.xlu0 %1477
    %v1479 = vsel %vm794, %v764, 0.0
    %1480 = vadd.xlane.f32.xlu0 %v1479
    %v1481 = vpop.xlane.xlu0 %1480
    %v1482 = vsel %vm794, %v765, 0.0
    %1483 = vadd.xlane.f32.xlu0 %v1482
    %v1484 = vpop.xlane.xlu0 %1483
    %v1485 = vsel %vm794, %v766, 0.0
    %1486 = vadd.xlane.f32.xlu0 %v1485
    %v1487 = vpop.xlane.xlu0 %1486
    %v1488 = vsel %vm794, %v767, 0.0
    %1489 = vadd.xlane.f32.xlu0 %v1488
    %v1490 = vpop.xlane.xlu0 %1489
    %v1491 = vsel %vm794, %v768, 0.0
    %1492 = vadd.xlane.f32.xlu0 %v1491
    %v1493 = vpop.xlane.xlu0 %1492
    %v1494 = vsel %vm794, %v769, 0.0
    %1495 = vadd.xlane.f32.xlu0 %v1494
    %v1496 = vpop.xlane.xlu0 %1495
    %v1497 = vsel %vm794, %v770, 0.0
    %1498 = vadd.xlane.f32.xlu0 %v1497
    %v1499 = vpop.xlane.xlu0 %1498
    %v1500 = vsel %vm794, %v771, 0.0
    %1501 = vadd.xlane.f32.xlu0 %v1500
    %v1502 = vpop.xlane.xlu0 %1501
    %v1503 = vsel %vm794, %v772, 0.0
    %1504 = vadd.xlane.f32.xlu0 %v1503
    %v1505 = vpop.xlane.xlu0 %1504
    %v1506 = vsel %vm794, %v773, 0.0
    %1507 = vadd.xlane.f32.xlu0 %v1506
    %v1508 = vpop.xlane.xlu0 %1507
    %v1509 = vsel %vm794, %v774, 0.0
    %1510 = vadd.xlane.f32.xlu0 %v1509
    %v1511 = vpop.xlane.xlu0 %1510
    %v1512 = vsel %vm794, %v775, 0.0
    %1513 = vadd.xlane.f32.xlu0 %v1512
    %v1514 = vpop.xlane.xlu0 %1513
    %v1515 = vsel %vm794, %v776, 0.0
    %1516 = vadd.xlane.f32.xlu0 %v1515
    %v1517 = vpop.xlane.xlu0 %1516
    %v1518 = vsel %vm794, %v777, 0.0
    %1519 = vadd.xlane.f32.xlu0 %v1518
    %v1520 = vpop.xlane.xlu0 %1519
    %v1521 = vsel %vm794, %v778, 0.0
    %1522 = vadd.xlane.f32.xlu0 %v1521
    %v1523 = vpop.xlane.xlu0 %1522
    %v1524 = vsel %vm794, %v779, 0.0
    %1525 = vadd.xlane.f32.xlu0 %v1524
    %v1526 = vpop.xlane.xlu0 %1525
    %v1527 = vsel %vm794, %v780, 0.0
    %1528 = vadd.xlane.f32.xlu0 %v1527
    %v1529 = vpop.xlane.xlu0 %1528
    %v1530 = vsel %vm794, %v781, 0.0
    %1531 = vadd.xlane.f32.xlu0 %v1530
    %v1532 = vpop.xlane.xlu0 %1531
    %v1533 = vsel %vm794, %v782, 0.0
    %1534 = vadd.xlane.f32.xlu0 %v1533
    %v1535 = vpop.xlane.xlu0 %1534
    %v1536 = vsel %vm794, %v783, 0.0
    %1537 = vadd.xlane.f32.xlu0 %v1536
    %v1538 = vpop.xlane.xlu0 %1537
    %v1539 = vsel %vm794, %v784, 0.0
    %1540 = vadd.xlane.f32.xlu0 %v1539
    %v1541 = vpop.xlane.xlu0 %1540
    %v1542 = vsel %vm794, %v785, 0.0
    %1543 = vadd.xlane.f32.xlu0 %v1542
    %v1544 = vpop.xlane.xlu0 %1543
    %v1545 = vsel %vm794, %v786, 0.0
    %1546 = vadd.xlane.f32.xlu0 %v1545
    %v1547 = vpop.xlane.xlu0 %1546
    %v1548 = vsel %vm794, %v787, 0.0
    %1549 = vadd.xlane.f32.xlu0 %v1548
    %v1550 = vpop.xlane.xlu0 %1549
    %v1551 = vsel %vm794, %v788, 0.0
    %1552 = vadd.xlane.f32.xlu0 %v1551
    %v1553 = vpop.xlane.xlu0 %1552
    %v1554 = vsel %vm794, %v789, 0.0
    %1555 = vadd.xlane.f32.xlu0 %v1554
    %v1556 = vpop.xlane.xlu0 %1555
    %v1557 = vsel %vm794, %v790, 0.0
    %1558 = vadd.xlane.f32.xlu0 %v1557
    %v1559 = vpop.xlane.xlu0 %1558
    %v1560 = vsel %vm794, %v791, 0.0
    %1561 = vadd.xlane.f32.xlu0 %v1560
    %v1562 = vpop.xlane.xlu0 %1561
    %v1819 = vlaneseq
    %v1820 = vand.u32 %v1819, 127
    %v1821 = vlaneseq
    %v1822 = vshrl.u32 %v1821, 7
    %v1823 = vsub.s32 %v1820, %v1822
    %v1824 = vrot.slane %v797, %v1823
    %v1825 = vadd.s32 %v1820, 4294967288
    %v1826 = vlaneseq
    %v1827 = vshrl.u32 %v1826, 7
    %v1828 = vsub.s32 %v1825, %v1827
    %v1829 = vrot.slane %v800, %v1828
    %vm1830 = vcmask 130112
    %v1831 = vsel %vm1830, %v1829, %v1824
    %v1832 = vadd.s32 %v1820, 4294967280
    %v1833 = vlaneseq
    %v1834 = vshrl.u32 %v1833, 7
    %v1835 = vsub.s32 %v1832, %v1834
    %v1836 = vrot.slane %v803, %v1835
    %vm1837 = vcmask 195712
    %v1838 = vsel %vm1837, %v1836, %v1831
    %v1839 = vadd.s32 %v1820, 4294967272
    %v1840 = vlaneseq
    %v1841 = vshrl.u32 %v1840, 7
    %v1842 = vsub.s32 %v1839, %v1841
    %v1843 = vrot.slane %v806, %v1842
    %vm1844 = vcmask 261312
    %v1845 = vsel %vm1844, %v1843, %v1838
    %v1846 = vadd.s32 %v1820, 4294967264
    %v1847 = vlaneseq
    %v1848 = vshrl.u32 %v1847, 7
    %v1849 = vsub.s32 %v1846, %v1848
    %v1850 = vrot.slane %v809, %v1849
    %vm1851 = vcmask 326912
    %v1852 = vsel %vm1851, %v1850, %v1845
    %v1853 = vadd.s32 %v1820, 4294967256
    %v1854 = vlaneseq
    %v1855 = vshrl.u32 %v1854, 7
    %v1856 = vsub.s32 %v1853, %v1855
    %v1857 = vrot.slane %v812, %v1856
    %vm1858 = vcmask 392512
    %v1859 = vsel %vm1858, %v1857, %v1852
    %v1860 = vadd.s32 %v1820, 4294967248
    %v1861 = vlaneseq
    %v1862 = vshrl.u32 %v1861, 7
    %v1863 = vsub.s32 %v1860, %v1862
    %v1864 = vrot.slane %v815, %v1863
    %vm1865 = vcmask 458112
    %v1866 = vsel %vm1865, %v1864, %v1859
    %v1867 = vadd.s32 %v1820, 4294967240
    %v1868 = vlaneseq
    %v1869 = vshrl.u32 %v1868, 7
    %v1870 = vsub.s32 %v1867, %v1869
    %v1871 = vrot.slane %v818, %v1870
    %vm1872 = vcmask 523712
    %v1873 = vsel %vm1872, %v1871, %v1866
    %v1874 = vadd.s32 %v1820, 4294967232
    %v1875 = vlaneseq
    %v1876 = vshrl.u32 %v1875, 7
    %v1877 = vsub.s32 %v1874, %v1876
    %v1878 = vrot.slane %v821, %v1877
    %vm1879 = vcmask 589312
    %v1880 = vsel %vm1879, %v1878, %v1873
    %v1881 = vadd.s32 %v1820, 4294967224
    %v1882 = vlaneseq
    %v1883 = vshrl.u32 %v1882, 7
    %v1884 = vsub.s32 %v1881, %v1883
    %v1885 = vrot.slane %v824, %v1884
    %vm1886 = vcmask 654912
    %v1887 = vsel %vm1886, %v1885, %v1880
    %v1888 = vadd.s32 %v1820, 4294967216
    %v1889 = vlaneseq
    %v1890 = vshrl.u32 %v1889, 7
    %v1891 = vsub.s32 %v1888, %v1890
    %v1892 = vrot.slane %v827, %v1891
    %vm1893 = vcmask 720512
    %v1894 = vsel %vm1893, %v1892, %v1887
    %v1895 = vadd.s32 %v1820, 4294967208
    %v1896 = vlaneseq
    %v1897 = vshrl.u32 %v1896, 7
    %v1898 = vsub.s32 %v1895, %v1897
    %v1899 = vrot.slane %v830, %v1898
    %vm1900 = vcmask 786112
    %v1901 = vsel %vm1900, %v1899, %v1894
    %v1902 = vadd.s32 %v1820, 4294967200
    %v1903 = vlaneseq
    %v1904 = vshrl.u32 %v1903, 7
    %v1905 = vsub.s32 %v1902, %v1904
    %v1906 = vrot.slane %v833, %v1905
    %vm1907 = vcmask 851712
    %v1908 = vsel %vm1907, %v1906, %v1901
    %v1909 = vadd.s32 %v1820, 4294967192
    %v1910 = vlaneseq
    %v1911 = vshrl.u32 %v1910, 7
    %v1912 = vsub.s32 %v1909, %v1911
    %v1913 = vrot.slane %v836, %v1912
    %vm1914 = vcmask 917312
    %v1915 = vsel %vm1914, %v1913, %v1908
    %v1916 = vadd.s32 %v1820, 4294967184
    %v1917 = vlaneseq
    %v1918 = vshrl.u32 %v1917, 7
    %v1919 = vsub.s32 %v1916, %v1918
    %v1920 = vrot.slane %v839, %v1919
    %vm1921 = vcmask 982912
    %v1922 = vsel %vm1921, %v1920, %v1915
    %v1923 = vadd.s32 %v1820, 4294967176
    %v1924 = vlaneseq
    %v1925 = vshrl.u32 %v1924, 7
    %v1926 = vsub.s32 %v1923, %v1925
    %v1927 = vrot.slane %v842, %v1926
    %vm1928 = vcmask 1048512
    %v1929 = vsel %vm1928, %v1927, %v1922
    %v1930 = vlaneseq
    %v1931 = vshrl.u32 %v1930, 7
    %v1932 = vsub.s32 %v1820, %v1931
    %v1933 = vrot.slane %v845, %v1932
    %v1934 = vlaneseq
    %v1935 = vshrl.u32 %v1934, 7
    %v1936 = vsub.s32 %v1825, %v1935
    %v1937 = vrot.slane %v848, %v1936
    %v1938 = vsel %vm1830, %v1937, %v1933
    %v1939 = vlaneseq
    %v1940 = vshrl.u32 %v1939, 7
    %v1941 = vsub.s32 %v1832, %v1940
    %v1942 = vrot.slane %v851, %v1941
    %v1943 = vsel %vm1837, %v1942, %v1938
    %v1944 = vlaneseq
    %v1945 = vshrl.u32 %v1944, 7
    %v1946 = vsub.s32 %v1839, %v1945
    %v1947 = vrot.slane %v854, %v1946
    %v1948 = vsel %vm1844, %v1947, %v1943
    %v1949 = vlaneseq
    %v1950 = vshrl.u32 %v1949, 7
    %v1951 = vsub.s32 %v1846, %v1950
    %v1952 = vrot.slane %v857, %v1951
    %v1953 = vsel %vm1851, %v1952, %v1948
    %v1954 = vlaneseq
    %v1955 = vshrl.u32 %v1954, 7
    %v1956 = vsub.s32 %v1853, %v1955
    %v1957 = vrot.slane %v860, %v1956
    %v1958 = vsel %vm1858, %v1957, %v1953
    %v1959 = vlaneseq
    %v1960 = vshrl.u32 %v1959, 7
    %v1961 = vsub.s32 %v1860, %v1960
    %v1962 = vrot.slane %v863, %v1961
    %v1963 = vsel %vm1865, %v1962, %v1958
    %v1964 = vlaneseq
    %v1965 = vshrl.u32 %v1964, 7
    %v1966 = vsub.s32 %v1867, %v1965
    %v1967 = vrot.slane %v866, %v1966
    %v1968 = vsel %vm1872, %v1967, %v1963
    %v1969 = vlaneseq
    %v1970 = vshrl.u32 %v1969, 7
    %v1971 = vsub.s32 %v1874, %v1970
    %v1972 = vrot.slane %v869, %v1971
    %v1973 = vsel %vm1879, %v1972, %v1968
    %v1974 = vlaneseq
    %v1975 = vshrl.u32 %v1974, 7
    %v1976 = vsub.s32 %v1881, %v1975
    %v1977 = vrot.slane %v872, %v1976
    %v1978 = vsel %vm1886, %v1977, %v1973
    %v1979 = vlaneseq
    %v1980 = vshrl.u32 %v1979, 7
    %v1981 = vsub.s32 %v1888, %v1980
    %v1982 = vrot.slane %v875, %v1981
    %v1983 = vsel %vm1893, %v1982, %v1978
    %v1984 = vlaneseq
    %v1985 = vshrl.u32 %v1984, 7
    %v1986 = vsub.s32 %v1895, %v1985
    %v1987 = vrot.slane %v878, %v1986
    %v1988 = vsel %vm1900, %v1987, %v1983
    %v1989 = vlaneseq
    %v1990 = vshrl.u32 %v1989, 7
    %v1991 = vsub.s32 %v1902, %v1990
    %v1992 = vrot.slane %v881, %v1991
    %v1993 = vsel %vm1907, %v1992, %v1988
    %v1994 = vlaneseq
    %v1995 = vshrl.u32 %v1994, 7
    %v1996 = vsub.s32 %v1909, %v1995
    %v1997 = vrot.slane %v884, %v1996
    %v1998 = vsel %vm1914, %v1997, %v1993
    %v1999 = vlaneseq
    %v2000 = vshrl.u32 %v1999, 7
    %v2001 = vsub.s32 %v1916, %v2000
    %v2002 = vrot.slane %v887, %v2001
    %v2003 = vsel %vm1921, %v2002, %v1998
    %v2004 = vlaneseq
    %v2005 = vshrl.u32 %v2004, 7
    %v2006 = vsub.s32 %v1923, %v2005
    %v2007 = vrot.slane %v890, %v2006
    %v2008 = vsel %vm1928, %v2007, %v2003
    %v2009 = vlaneseq
    %v2010 = vshrl.u32 %v2009, 7
    %v2011 = vsub.s32 %v1820, %v2010
    %v2012 = vrot.slane %v893, %v2011
    %v2013 = vlaneseq
    %v2014 = vshrl.u32 %v2013, 7
    %v2015 = vsub.s32 %v1825, %v2014
    %v2016 = vrot.slane %v896, %v2015
    %v2017 = vsel %vm1830, %v2016, %v2012
    %v2018 = vlaneseq
    %v2019 = vshrl.u32 %v2018, 7
    %v2020 = vsub.s32 %v1832, %v2019
    %v2021 = vrot.slane %v899, %v2020
    %v2022 = vsel %vm1837, %v2021, %v2017
    %v2023 = vlaneseq
    %v2024 = vshrl.u32 %v2023, 7
    %v2025 = vsub.s32 %v1839, %v2024
    %v2026 = vrot.slane %v902, %v2025
    %v2027 = vsel %vm1844, %v2026, %v2022
    %v2028 = vlaneseq
    %v2029 = vshrl.u32 %v2028, 7
    %v2030 = vsub.s32 %v1846, %v2029
    %v2031 = vrot.slane %v905, %v2030
    %v2032 = vsel %vm1851, %v2031, %v2027
    %v2033 = vlaneseq
    %v2034 = vshrl.u32 %v2033, 7
    %v2035 = vsub.s32 %v1853, %v2034
    %v2036 = vrot.slane %v908, %v2035
    %v2037 = vsel %vm1858, %v2036, %v2032
    %v2038 = vlaneseq
    %v2039 = vshrl.u32 %v2038, 7
    %v2040 = vsub.s32 %v1860, %v2039
    %v2041 = vrot.slane %v911, %v2040
    %v2042 = vsel %vm1865, %v2041, %v2037
    %v2043 = vlaneseq
    %v2044 = vshrl.u32 %v2043, 7
    %v2045 = vsub.s32 %v1867, %v2044
    %v2046 = vrot.slane %v914, %v2045
    %v2047 = vsel %vm1872, %v2046, %v2042
    %v2048 = vlaneseq
    %v2049 = vshrl.u32 %v2048, 7
    %v2050 = vsub.s32 %v1874, %v2049
    %v2051 = vrot.slane %v917, %v2050
    %v2052 = vsel %vm1879, %v2051, %v2047
    %v2053 = vlaneseq
    %v2054 = vshrl.u32 %v2053, 7
    %v2055 = vsub.s32 %v1881, %v2054
    %v2056 = vrot.slane %v920, %v2055
    %v2057 = vsel %vm1886, %v2056, %v2052
    %v2058 = vlaneseq
    %v2059 = vshrl.u32 %v2058, 7
    %v2060 = vsub.s32 %v1888, %v2059
    %v2061 = vrot.slane %v923, %v2060
    %v2062 = vsel %vm1893, %v2061, %v2057
    %v2063 = vlaneseq
    %v2064 = vshrl.u32 %v2063, 7
    %v2065 = vsub.s32 %v1895, %v2064
    %v2066 = vrot.slane %v926, %v2065
    %v2067 = vsel %vm1900, %v2066, %v2062
    %v2068 = vlaneseq
    %v2069 = vshrl.u32 %v2068, 7
    %v2070 = vsub.s32 %v1902, %v2069
    %v2071 = vrot.slane %v929, %v2070
    %v2072 = vsel %vm1907, %v2071, %v2067
    %v2073 = vlaneseq
    %v2074 = vshrl.u32 %v2073, 7
    %v2075 = vsub.s32 %v1909, %v2074
    %v2076 = vrot.slane %v932, %v2075
    %v2077 = vsel %vm1914, %v2076, %v2072
    %v2078 = vlaneseq
    %v2079 = vshrl.u32 %v2078, 7
    %v2080 = vsub.s32 %v1916, %v2079
    %v2081 = vrot.slane %v935, %v2080
    %v2082 = vsel %vm1921, %v2081, %v2077
    %v2083 = vlaneseq
    %v2084 = vshrl.u32 %v2083, 7
    %v2085 = vsub.s32 %v1923, %v2084
    %v2086 = vrot.slane %v938, %v2085
    %v2087 = vsel %vm1928, %v2086, %v2082
    %v2088 = vlaneseq
    %v2089 = vshrl.u32 %v2088, 7
    %v2090 = vsub.s32 %v1820, %v2089
    %v2091 = vrot.slane %v941, %v2090
    %v2092 = vlaneseq
    %v2093 = vshrl.u32 %v2092, 7
    %v2094 = vsub.s32 %v1825, %v2093
    %v2095 = vrot.slane %v944, %v2094
    %v2096 = vsel %vm1830, %v2095, %v2091
    %v2097 = vlaneseq
    %v2098 = vshrl.u32 %v2097, 7
    %v2099 = vsub.s32 %v1832, %v2098
    %v2100 = vrot.slane %v947, %v2099
    %v2101 = vsel %vm1837, %v2100, %v2096
    %v2102 = vlaneseq
    %v2103 = vshrl.u32 %v2102, 7
    %v2104 = vsub.s32 %v1839, %v2103
    %v2105 = vrot.slane %v950, %v2104
    %v2106 = vsel %vm1844, %v2105, %v2101
    %v2107 = vlaneseq
    %v2108 = vshrl.u32 %v2107, 7
    %v2109 = vsub.s32 %v1846, %v2108
    %v2110 = vrot.slane %v953, %v2109
    %v2111 = vsel %vm1851, %v2110, %v2106
    %v2112 = vlaneseq
    %v2113 = vshrl.u32 %v2112, 7
    %v2114 = vsub.s32 %v1853, %v2113
    %v2115 = vrot.slane %v956, %v2114
    %v2116 = vsel %vm1858, %v2115, %v2111
    %v2117 = vlaneseq
    %v2118 = vshrl.u32 %v2117, 7
    %v2119 = vsub.s32 %v1860, %v2118
    %v2120 = vrot.slane %v959, %v2119
    %v2121 = vsel %vm1865, %v2120, %v2116
    %v2122 = vlaneseq
    %v2123 = vshrl.u32 %v2122, 7
    %v2124 = vsub.s32 %v1867, %v2123
    %v2125 = vrot.slane %v962, %v2124
    %v2126 = vsel %vm1872, %v2125, %v2121
    %v2127 = vlaneseq
    %v2128 = vshrl.u32 %v2127, 7
    %v2129 = vsub.s32 %v1874, %v2128
    %v2130 = vrot.slane %v965, %v2129
    %v2131 = vsel %vm1879, %v2130, %v2126
    %v2132 = vlaneseq
    %v2133 = vshrl.u32 %v2132, 7
    %v2134 = vsub.s32 %v1881, %v2133
    %v2135 = vrot.slane %v968, %v2134
    %v2136 = vsel %vm1886, %v2135, %v2131
    %v2137 = vlaneseq
    %v2138 = vshrl.u32 %v2137, 7
    %v2139 = vsub.s32 %v1888, %v2138
    %v2140 = vrot.slane %v971, %v2139
    %v2141 = vsel %vm1893, %v2140, %v2136
    %v2142 = vlaneseq
    %v2143 = vshrl.u32 %v2142, 7
    %v2144 = vsub.s32 %v1895, %v2143
    %v2145 = vrot.slane %v974, %v2144
    %v2146 = vsel %vm1900, %v2145, %v2141
    %v2147 = vlaneseq
    %v2148 = vshrl.u32 %v2147, 7
    %v2149 = vsub.s32 %v1902, %v2148
    %v2150 = vrot.slane %v977, %v2149
    %v2151 = vsel %vm1907, %v2150, %v2146
    %v2152 = vlaneseq
    %v2153 = vshrl.u32 %v2152, 7
    %v2154 = vsub.s32 %v1909, %v2153
    %v2155 = vrot.slane %v980, %v2154
    %v2156 = vsel %vm1914, %v2155, %v2151
    %v2157 = vlaneseq
    %v2158 = vshrl.u32 %v2157, 7
    %v2159 = vsub.s32 %v1916, %v2158
    %v2160 = vrot.slane %v983, %v2159
    %v2161 = vsel %vm1921, %v2160, %v2156
    %v2162 = vlaneseq
    %v2163 = vshrl.u32 %v2162, 7
    %v2164 = vsub.s32 %v1923, %v2163
    %v2165 = vrot.slane %v986, %v2164
    %v2166 = vsel %vm1928, %v2165, %v2161
    %v2167 = vlaneseq
    %v2168 = vshrl.u32 %v2167, 7
    %v2169 = vsub.s32 %v1820, %v2168
    %v2170 = vrot.slane %v989, %v2169
    %v2171 = vlaneseq
    %v2172 = vshrl.u32 %v2171, 7
    %v2173 = vsub.s32 %v1825, %v2172
    %v2174 = vrot.slane %v992, %v2173
    %v2175 = vsel %vm1830, %v2174, %v2170
    %v2176 = vlaneseq
    %v2177 = vshrl.u32 %v2176, 7
    %v2178 = vsub.s32 %v1832, %v2177
    %v2179 = vrot.slane %v995, %v2178
    %v2180 = vsel %vm1837, %v2179, %v2175
    %v2181 = vlaneseq
    %v2182 = vshrl.u32 %v2181, 7
    %v2183 = vsub.s32 %v1839, %v2182
    %v2184 = vrot.slane %v998, %v2183
    %v2185 = vsel %vm1844, %v2184, %v2180
    %v2186 = vlaneseq
    %v2187 = vshrl.u32 %v2186, 7
    %v2188 = vsub.s32 %v1846, %v2187
    %v2189 = vrot.slane %v1001, %v2188
    %v2190 = vsel %vm1851, %v2189, %v2185
    %v2191 = vlaneseq
    %v2192 = vshrl.u32 %v2191, 7
    %v2193 = vsub.s32 %v1853, %v2192
    %v2194 = vrot.slane %v1004, %v2193
    %v2195 = vsel %vm1858, %v2194, %v2190
    %v2196 = vlaneseq
    %v2197 = vshrl.u32 %v2196, 7
    %v2198 = vsub.s32 %v1860, %v2197
    %v2199 = vrot.slane %v1007, %v2198
    %v2200 = vsel %vm1865, %v2199, %v2195
    %v2201 = vlaneseq
    %v2202 = vshrl.u32 %v2201, 7
    %v2203 = vsub.s32 %v1867, %v2202
    %v2204 = vrot.slane %v1010, %v2203
    %v2205 = vsel %vm1872, %v2204, %v2200
    %v2206 = vlaneseq
    %v2207 = vshrl.u32 %v2206, 7
    %v2208 = vsub.s32 %v1874, %v2207
    %v2209 = vrot.slane %v1013, %v2208
    %v2210 = vsel %vm1879, %v2209, %v2205
    %v2211 = vlaneseq
    %v2212 = vshrl.u32 %v2211, 7
    %v2213 = vsub.s32 %v1881, %v2212
    %v2214 = vrot.slane %v1016, %v2213
    %v2215 = vsel %vm1886, %v2214, %v2210
    %v2216 = vlaneseq
    %v2217 = vshrl.u32 %v2216, 7
    %v2218 = vsub.s32 %v1888, %v2217
    %v2219 = vrot.slane %v1019, %v2218
    %v2220 = vsel %vm1893, %v2219, %v2215
    %v2221 = vlaneseq
    %v2222 = vshrl.u32 %v2221, 7
    %v2223 = vsub.s32 %v1895, %v2222
    %v2224 = vrot.slane %v1022, %v2223
    %v2225 = vsel %vm1900, %v2224, %v2220
    %v2226 = vlaneseq
    %v2227 = vshrl.u32 %v2226, 7
    %v2228 = vsub.s32 %v1902, %v2227
    %v2229 = vrot.slane %v1025, %v2228
    %v2230 = vsel %vm1907, %v2229, %v2225
    %v2231 = vlaneseq
    %v2232 = vshrl.u32 %v2231, 7
    %v2233 = vsub.s32 %v1909, %v2232
    %v2234 = vrot.slane %v1028, %v2233
    %v2235 = vsel %vm1914, %v2234, %v2230
    %v2236 = vlaneseq
    %v2237 = vshrl.u32 %v2236, 7
    %v2238 = vsub.s32 %v1916, %v2237
    %v2239 = vrot.slane %v1031, %v2238
    %v2240 = vsel %vm1921, %v2239, %v2235
    %v2241 = vlaneseq
    %v2242 = vshrl.u32 %v2241, 7
    %v2243 = vsub.s32 %v1923, %v2242
    %v2244 = vrot.slane %v1034, %v2243
    %v2245 = vsel %vm1928, %v2244, %v2240
    %v2246 = vlaneseq
    %v2247 = vshrl.u32 %v2246, 7
    %v2248 = vsub.s32 %v1820, %v2247
    %v2249 = vrot.slane %v1037, %v2248
    %v2250 = vlaneseq
    %v2251 = vshrl.u32 %v2250, 7
    %v2252 = vsub.s32 %v1825, %v2251
    %v2253 = vrot.slane %v1040, %v2252
    %v2254 = vsel %vm1830, %v2253, %v2249
    %v2255 = vlaneseq
    %v2256 = vshrl.u32 %v2255, 7
    %v2257 = vsub.s32 %v1832, %v2256
    %v2258 = vrot.slane %v1043, %v2257
    %v2259 = vsel %vm1837, %v2258, %v2254
    %v2260 = vlaneseq
    %v2261 = vshrl.u32 %v2260, 7
    %v2262 = vsub.s32 %v1839, %v2261
    %v2263 = vrot.slane %v1046, %v2262
    %v2264 = vsel %vm1844, %v2263, %v2259
    %v2265 = vlaneseq
    %v2266 = vshrl.u32 %v2265, 7
    %v2267 = vsub.s32 %v1846, %v2266
    %v2268 = vrot.slane %v1049, %v2267
    %v2269 = vsel %vm1851, %v2268, %v2264
    %v2270 = vlaneseq
    %v2271 = vshrl.u32 %v2270, 7
    %v2272 = vsub.s32 %v1853, %v2271
    %v2273 = vrot.slane %v1052, %v2272
    %v2274 = vsel %vm1858, %v2273, %v2269
    %v2275 = vlaneseq
    %v2276 = vshrl.u32 %v2275, 7
    %v2277 = vsub.s32 %v1860, %v2276
    %v2278 = vrot.slane %v1055, %v2277
    %v2279 = vsel %vm1865, %v2278, %v2274
    %v2280 = vlaneseq
    %v2281 = vshrl.u32 %v2280, 7
    %v2282 = vsub.s32 %v1867, %v2281
    %v2283 = vrot.slane %v1058, %v2282
    %v2284 = vsel %vm1872, %v2283, %v2279
    %v2285 = vlaneseq
    %v2286 = vshrl.u32 %v2285, 7
    %v2287 = vsub.s32 %v1874, %v2286
    %v2288 = vrot.slane %v1061, %v2287
    %v2289 = vsel %vm1879, %v2288, %v2284
    %v2290 = vlaneseq
    %v2291 = vshrl.u32 %v2290, 7
    %v2292 = vsub.s32 %v1881, %v2291
    %v2293 = vrot.slane %v1064, %v2292
    %v2294 = vsel %vm1886, %v2293, %v2289
    %v2295 = vlaneseq
    %v2296 = vshrl.u32 %v2295, 7
    %v2297 = vsub.s32 %v1888, %v2296
    %v2298 = vrot.slane %v1067, %v2297
    %v2299 = vsel %vm1893, %v2298, %v2294
    %v2300 = vlaneseq
    %v2301 = vshrl.u32 %v2300, 7
    %v2302 = vsub.s32 %v1895, %v2301
    %v2303 = vrot.slane %v1070, %v2302
    %v2304 = vsel %vm1900, %v2303, %v2299
    %v2305 = vlaneseq
    %v2306 = vshrl.u32 %v2305, 7
    %v2307 = vsub.s32 %v1902, %v2306
    %v2308 = vrot.slane %v1073, %v2307
    %v2309 = vsel %vm1907, %v2308, %v2304
    %v2310 = vlaneseq
    %v2311 = vshrl.u32 %v2310, 7
    %v2312 = vsub.s32 %v1909, %v2311
    %v2313 = vrot.slane %v1076, %v2312
    %v2314 = vsel %vm1914, %v2313, %v2309
    %v2315 = vlaneseq
    %v2316 = vshrl.u32 %v2315, 7
    %v2317 = vsub.s32 %v1916, %v2316
    %v2318 = vrot.slane %v1079, %v2317
    %v2319 = vsel %vm1921, %v2318, %v2314
    %v2320 = vlaneseq
    %v2321 = vshrl.u32 %v2320, 7
    %v2322 = vsub.s32 %v1923, %v2321
    %v2323 = vrot.slane %v1082, %v2322
    %v2324 = vsel %vm1928, %v2323, %v2319
    %v2325 = vlaneseq
    %v2326 = vshrl.u32 %v2325, 7
    %v2327 = vsub.s32 %v1820, %v2326
    %v2328 = vrot.slane %v1085, %v2327
    %v2329 = vlaneseq
    %v2330 = vshrl.u32 %v2329, 7
    %v2331 = vsub.s32 %v1825, %v2330
    %v2332 = vrot.slane %v1088, %v2331
    %v2333 = vsel %vm1830, %v2332, %v2328
    %v2334 = vlaneseq
    %v2335 = vshrl.u32 %v2334, 7
    %v2336 = vsub.s32 %v1832, %v2335
    %v2337 = vrot.slane %v1091, %v2336
    %v2338 = vsel %vm1837, %v2337, %v2333
    %v2339 = vlaneseq
    %v2340 = vshrl.u32 %v2339, 7
    %v2341 = vsub.s32 %v1839, %v2340
    %v2342 = vrot.slane %v1094, %v2341
    %v2343 = vsel %vm1844, %v2342, %v2338
    %v2344 = vlaneseq
    %v2345 = vshrl.u32 %v2344, 7
    %v2346 = vsub.s32 %v1846, %v2345
    %v2347 = vrot.slane %v1097, %v2346
    %v2348 = vsel %vm1851, %v2347, %v2343
    %v2349 = vlaneseq
    %v2350 = vshrl.u32 %v2349, 7
    %v2351 = vsub.s32 %v1853, %v2350
    %v2352 = vrot.slane %v1100, %v2351
    %v2353 = vsel %vm1858, %v2352, %v2348
    %v2354 = vlaneseq
    %v2355 = vshrl.u32 %v2354, 7
    %v2356 = vsub.s32 %v1860, %v2355
    %v2357 = vrot.slane %v1103, %v2356
    %v2358 = vsel %vm1865, %v2357, %v2353
    %v2359 = vlaneseq
    %v2360 = vshrl.u32 %v2359, 7
    %v2361 = vsub.s32 %v1867, %v2360
    %v2362 = vrot.slane %v1106, %v2361
    %v2363 = vsel %vm1872, %v2362, %v2358
    %v2364 = vlaneseq
    %v2365 = vshrl.u32 %v2364, 7
    %v2366 = vsub.s32 %v1874, %v2365
    %v2367 = vrot.slane %v1109, %v2366
    %v2368 = vsel %vm1879, %v2367, %v2363
    %v2369 = vlaneseq
    %v2370 = vshrl.u32 %v2369, 7
    %v2371 = vsub.s32 %v1881, %v2370
    %v2372 = vrot.slane %v1112, %v2371
    %v2373 = vsel %vm1886, %v2372, %v2368
    %v2374 = vlaneseq
    %v2375 = vshrl.u32 %v2374, 7
    %v2376 = vsub.s32 %v1888, %v2375
    %v2377 = vrot.slane %v1115, %v2376
    %v2378 = vsel %vm1893, %v2377, %v2373
    %v2379 = vlaneseq
    %v2380 = vshrl.u32 %v2379, 7
    %v2381 = vsub.s32 %v1895, %v2380
    %v2382 = vrot.slane %v1118, %v2381
    %v2383 = vsel %vm1900, %v2382, %v2378
    %v2384 = vlaneseq
    %v2385 = vshrl.u32 %v2384, 7
    %v2386 = vsub.s32 %v1902, %v2385
    %v2387 = vrot.slane %v1121, %v2386
    %v2388 = vsel %vm1907, %v2387, %v2383
    %v2389 = vlaneseq
    %v2390 = vshrl.u32 %v2389, 7
    %v2391 = vsub.s32 %v1909, %v2390
    %v2392 = vrot.slane %v1124, %v2391
    %v2393 = vsel %vm1914, %v2392, %v2388
    %v2394 = vlaneseq
    %v2395 = vshrl.u32 %v2394, 7
    %v2396 = vsub.s32 %v1916, %v2395
    %v2397 = vrot.slane %v1127, %v2396
    %v2398 = vsel %vm1921, %v2397, %v2393
    %v2399 = vlaneseq
    %v2400 = vshrl.u32 %v2399, 7
    %v2401 = vsub.s32 %v1923, %v2400
    %v2402 = vrot.slane %v1130, %v2401
    %v2403 = vsel %vm1928, %v2402, %v2398
    %v2404 = vlaneseq
    %v2405 = vshrl.u32 %v2404, 7
    %v2406 = vsub.s32 %v1820, %v2405
    %v2407 = vrot.slane %v1133, %v2406
    %v2408 = vlaneseq
    %v2409 = vshrl.u32 %v2408, 7
    %v2410 = vsub.s32 %v1825, %v2409
    %v2411 = vrot.slane %v1136, %v2410
    %v2412 = vsel %vm1830, %v2411, %v2407
    %v2413 = vlaneseq
    %v2414 = vshrl.u32 %v2413, 7
    %v2415 = vsub.s32 %v1832, %v2414
    %v2416 = vrot.slane %v1139, %v2415
    %v2417 = vsel %vm1837, %v2416, %v2412
    %v2418 = vlaneseq
    %v2419 = vshrl.u32 %v2418, 7
    %v2420 = vsub.s32 %v1839, %v2419
    %v2421 = vrot.slane %v1142, %v2420
    %v2422 = vsel %vm1844, %v2421, %v2417
    %v2423 = vlaneseq
    %v2424 = vshrl.u32 %v2423, 7
    %v2425 = vsub.s32 %v1846, %v2424
    %v2426 = vrot.slane %v1145, %v2425
    %v2427 = vsel %vm1851, %v2426, %v2422
    %v2428 = vlaneseq
    %v2429 = vshrl.u32 %v2428, 7
    %v2430 = vsub.s32 %v1853, %v2429
    %v2431 = vrot.slane %v1148, %v2430
    %v2432 = vsel %vm1858, %v2431, %v2427
    %v2433 = vlaneseq
    %v2434 = vshrl.u32 %v2433, 7
    %v2435 = vsub.s32 %v1860, %v2434
    %v2436 = vrot.slane %v1151, %v2435
    %v2437 = vsel %vm1865, %v2436, %v2432
    %v2438 = vlaneseq
    %v2439 = vshrl.u32 %v2438, 7
    %v2440 = vsub.s32 %v1867, %v2439
    %v2441 = vrot.slane %v1154, %v2440
    %v2442 = vsel %vm1872, %v2441, %v2437
    %v2443 = vlaneseq
    %v2444 = vshrl.u32 %v2443, 7
    %v2445 = vsub.s32 %v1874, %v2444
    %v2446 = vrot.slane %v1157, %v2445
    %v2447 = vsel %vm1879, %v2446, %v2442
    %v2448 = vlaneseq
    %v2449 = vshrl.u32 %v2448, 7
    %v2450 = vsub.s32 %v1881, %v2449
    %v2451 = vrot.slane %v1160, %v2450
    %v2452 = vsel %vm1886, %v2451, %v2447
    %v2453 = vlaneseq
    %v2454 = vshrl.u32 %v2453, 7
    %v2455 = vsub.s32 %v1888, %v2454
    %v2456 = vrot.slane %v1163, %v2455
    %v2457 = vsel %vm1893, %v2456, %v2452
    %v2458 = vlaneseq
    %v2459 = vshrl.u32 %v2458, 7
    %v2460 = vsub.s32 %v1895, %v2459
    %v2461 = vrot.slane %v1166, %v2460
    %v2462 = vsel %vm1900, %v2461, %v2457
    %v2463 = vlaneseq
    %v2464 = vshrl.u32 %v2463, 7
    %v2465 = vsub.s32 %v1902, %v2464
    %v2466 = vrot.slane %v1169, %v2465
    %v2467 = vsel %vm1907, %v2466, %v2462
    %v2468 = vlaneseq
    %v2469 = vshrl.u32 %v2468, 7
    %v2470 = vsub.s32 %v1909, %v2469
    %v2471 = vrot.slane %v1172, %v2470
    %v2472 = vsel %vm1914, %v2471, %v2467
    %v2473 = vlaneseq
    %v2474 = vshrl.u32 %v2473, 7
    %v2475 = vsub.s32 %v1916, %v2474
    %v2476 = vrot.slane %v1175, %v2475
    %v2477 = vsel %vm1921, %v2476, %v2472
    %v2478 = vlaneseq
    %v2479 = vshrl.u32 %v2478, 7
    %v2480 = vsub.s32 %v1923, %v2479
    %v2481 = vrot.slane %v1178, %v2480
    %v2482 = vsel %vm1928, %v2481, %v2477
    %v2483 = vlaneseq
    %v2484 = vshrl.u32 %v2483, 7
    %v2485 = vsub.s32 %v1820, %v2484
    %v2486 = vrot.slane %v1181, %v2485
    %v2487 = vlaneseq
    %v2488 = vshrl.u32 %v2487, 7
    %v2489 = vsub.s32 %v1825, %v2488
    %v2490 = vrot.slane %v1184, %v2489
    %v2491 = vsel %vm1830, %v2490, %v2486
    %v2492 = vlaneseq
    %v2493 = vshrl.u32 %v2492, 7
    %v2494 = vsub.s32 %v1832, %v2493
    %v2495 = vrot.slane %v1187, %v2494
    %v2496 = vsel %vm1837, %v2495, %v2491
    %v2497 = vlaneseq
    %v2498 = vshrl.u32 %v2497, 7
    %v2499 = vsub.s32 %v1839, %v2498
    %v2500 = vrot.slane %v1190, %v2499
    %v2501 = vsel %vm1844, %v2500, %v2496
    %v2502 = vlaneseq
    %v2503 = vshrl.u32 %v2502, 7
    %v2504 = vsub.s32 %v1846, %v2503
    %v2505 = vrot.slane %v1193, %v2504
    %v2506 = vsel %vm1851, %v2505, %v2501
    %v2507 = vlaneseq
    %v2508 = vshrl.u32 %v2507, 7
    %v2509 = vsub.s32 %v1853, %v2508
    %v2510 = vrot.slane %v1196, %v2509
    %v2511 = vsel %vm1858, %v2510, %v2506
    %v2512 = vlaneseq
    %v2513 = vshrl.u32 %v2512, 7
    %v2514 = vsub.s32 %v1860, %v2513
    %v2515 = vrot.slane %v1199, %v2514
    %v2516 = vsel %vm1865, %v2515, %v2511
    %v2517 = vlaneseq
    %v2518 = vshrl.u32 %v2517, 7
    %v2519 = vsub.s32 %v1867, %v2518
    %v2520 = vrot.slane %v1202, %v2519
    %v2521 = vsel %vm1872, %v2520, %v2516
    %v2522 = vlaneseq
    %v2523 = vshrl.u32 %v2522, 7
    %v2524 = vsub.s32 %v1874, %v2523
    %v2525 = vrot.slane %v1205, %v2524
    %v2526 = vsel %vm1879, %v2525, %v2521
    %v2527 = vlaneseq
    %v2528 = vshrl.u32 %v2527, 7
    %v2529 = vsub.s32 %v1881, %v2528
    %v2530 = vrot.slane %v1208, %v2529
    %v2531 = vsel %vm1886, %v2530, %v2526
    %v2532 = vlaneseq
    %v2533 = vshrl.u32 %v2532, 7
    %v2534 = vsub.s32 %v1888, %v2533
    %v2535 = vrot.slane %v1211, %v2534
    %v2536 = vsel %vm1893, %v2535, %v2531
    %v2537 = vlaneseq
    %v2538 = vshrl.u32 %v2537, 7
    %v2539 = vsub.s32 %v1895, %v2538
    %v2540 = vrot.slane %v1214, %v2539
    %v2541 = vsel %vm1900, %v2540, %v2536
    %v2542 = vlaneseq
    %v2543 = vshrl.u32 %v2542, 7
    %v2544 = vsub.s32 %v1902, %v2543
    %v2545 = vrot.slane %v1217, %v2544
    %v2546 = vsel %vm1907, %v2545, %v2541
    %v2547 = vlaneseq
    %v2548 = vshrl.u32 %v2547, 7
    %v2549 = vsub.s32 %v1909, %v2548
    %v2550 = vrot.slane %v1220, %v2549
    %v2551 = vsel %vm1914, %v2550, %v2546
    %v2552 = vlaneseq
    %v2553 = vshrl.u32 %v2552, 7
    %v2554 = vsub.s32 %v1916, %v2553
    %v2555 = vrot.slane %v1223, %v2554
    %v2556 = vsel %vm1921, %v2555, %v2551
    %v2557 = vlaneseq
    %v2558 = vshrl.u32 %v2557, 7
    %v2559 = vsub.s32 %v1923, %v2558
    %v2560 = vrot.slane %v1226, %v2559
    %v2561 = vsel %vm1928, %v2560, %v2556
    %v2562 = vlaneseq
    %v2563 = vshrl.u32 %v2562, 7
    %v2564 = vsub.s32 %v1820, %v2563
    %v2565 = vrot.slane %v1229, %v2564
    %v2566 = vlaneseq
    %v2567 = vshrl.u32 %v2566, 7
    %v2568 = vsub.s32 %v1825, %v2567
    %v2569 = vrot.slane %v1232, %v2568
    %v2570 = vsel %vm1830, %v2569, %v2565
    %v2571 = vlaneseq
    %v2572 = vshrl.u32 %v2571, 7
    %v2573 = vsub.s32 %v1832, %v2572
    %v2574 = vrot.slane %v1235, %v2573
    %v2575 = vsel %vm1837, %v2574, %v2570
    %v2576 = vlaneseq
    %v2577 = vshrl.u32 %v2576, 7
    %v2578 = vsub.s32 %v1839, %v2577
    %v2579 = vrot.slane %v1238, %v2578
    %v2580 = vsel %vm1844, %v2579, %v2575
    %v2581 = vlaneseq
    %v2582 = vshrl.u32 %v2581, 7
    %v2583 = vsub.s32 %v1846, %v2582
    %v2584 = vrot.slane %v1241, %v2583
    %v2585 = vsel %vm1851, %v2584, %v2580
    %v2586 = vlaneseq
    %v2587 = vshrl.u32 %v2586, 7
    %v2588 = vsub.s32 %v1853, %v2587
    %v2589 = vrot.slane %v1244, %v2588
    %v2590 = vsel %vm1858, %v2589, %v2585
    %v2591 = vlaneseq
    %v2592 = vshrl.u32 %v2591, 7
    %v2593 = vsub.s32 %v1860, %v2592
    %v2594 = vrot.slane %v1247, %v2593
    %v2595 = vsel %vm1865, %v2594, %v2590
    %v2596 = vlaneseq
    %v2597 = vshrl.u32 %v2596, 7
    %v2598 = vsub.s32 %v1867, %v2597
    %v2599 = vrot.slane %v1250, %v2598
    %v2600 = vsel %vm1872, %v2599, %v2595
    %v2601 = vlaneseq
    %v2602 = vshrl.u32 %v2601, 7
    %v2603 = vsub.s32 %v1874, %v2602
    %v2604 = vrot.slane %v1253, %v2603
    %v2605 = vsel %vm1879, %v2604, %v2600
    %v2606 = vlaneseq
    %v2607 = vshrl.u32 %v2606, 7
    %v2608 = vsub.s32 %v1881, %v2607
    %v2609 = vrot.slane %v1256, %v2608
    %v2610 = vsel %vm1886, %v2609, %v2605
    %v2611 = vlaneseq
    %v2612 = vshrl.u32 %v2611, 7
    %v2613 = vsub.s32 %v1888, %v2612
    %v2614 = vrot.slane %v1259, %v2613
    %v2615 = vsel %vm1893, %v2614, %v2610
    %v2616 = vlaneseq
    %v2617 = vshrl.u32 %v2616, 7
    %v2618 = vsub.s32 %v1895, %v2617
    %v2619 = vrot.slane %v1262, %v2618
    %v2620 = vsel %vm1900, %v2619, %v2615
    %v2621 = vlaneseq
    %v2622 = vshrl.u32 %v2621, 7
    %v2623 = vsub.s32 %v1902, %v2622
    %v2624 = vrot.slane %v1265, %v2623
    %v2625 = vsel %vm1907, %v2624, %v2620
    %v2626 = vlaneseq
    %v2627 = vshrl.u32 %v2626, 7
    %v2628 = vsub.s32 %v1909, %v2627
    %v2629 = vrot.slane %v1268, %v2628
    %v2630 = vsel %vm1914, %v2629, %v2625
    %v2631 = vlaneseq
    %v2632 = vshrl.u32 %v2631, 7
    %v2633 = vsub.s32 %v1916, %v2632
    %v2634 = vrot.slane %v1271, %v2633
    %v2635 = vsel %vm1921, %v2634, %v2630
    %v2636 = vlaneseq
    %v2637 = vshrl.u32 %v2636, 7
    %v2638 = vsub.s32 %v1923, %v2637
    %v2639 = vrot.slane %v1274, %v2638
    %v2640 = vsel %vm1928, %v2639, %v2635
    %v2641 = vlaneseq
    %v2642 = vshrl.u32 %v2641, 7
    %v2643 = vsub.s32 %v1820, %v2642
    %v2644 = vrot.slane %v1277, %v2643
    %v2645 = vlaneseq
    %v2646 = vshrl.u32 %v2645, 7
    %v2647 = vsub.s32 %v1825, %v2646
    %v2648 = vrot.slane %v1280, %v2647
    %v2649 = vsel %vm1830, %v2648, %v2644
    %v2650 = vlaneseq
    %v2651 = vshrl.u32 %v2650, 7
    %v2652 = vsub.s32 %v1832, %v2651
    %v2653 = vrot.slane %v1283, %v2652
    %v2654 = vsel %vm1837, %v2653, %v2649
    %v2655 = vlaneseq
    %v2656 = vshrl.u32 %v2655, 7
    %v2657 = vsub.s32 %v1839, %v2656
    %v2658 = vrot.slane %v1286, %v2657
    %v2659 = vsel %vm1844, %v2658, %v2654
    %v2660 = vlaneseq
    %v2661 = vshrl.u32 %v2660, 7
    %v2662 = vsub.s32 %v1846, %v2661
    %v2663 = vrot.slane %v1289, %v2662
    %v2664 = vsel %vm1851, %v2663, %v2659
    %v2665 = vlaneseq
    %v2666 = vshrl.u32 %v2665, 7
    %v2667 = vsub.s32 %v1853, %v2666
    %v2668 = vrot.slane %v1292, %v2667
    %v2669 = vsel %vm1858, %v2668, %v2664
    %v2670 = vlaneseq
    %v2671 = vshrl.u32 %v2670, 7
    %v2672 = vsub.s32 %v1860, %v2671
    %v2673 = vrot.slane %v1295, %v2672
    %v2674 = vsel %vm1865, %v2673, %v2669
    %v2675 = vlaneseq
    %v2676 = vshrl.u32 %v2675, 7
    %v2677 = vsub.s32 %v1867, %v2676
    %v2678 = vrot.slane %v1298, %v2677
    %v2679 = vsel %vm1872, %v2678, %v2674
    %v2680 = vlaneseq
    %v2681 = vshrl.u32 %v2680, 7
    %v2682 = vsub.s32 %v1874, %v2681
    %v2683 = vrot.slane %v1301, %v2682
    %v2684 = vsel %vm1879, %v2683, %v2679
    %v2685 = vlaneseq
    %v2686 = vshrl.u32 %v2685, 7
    %v2687 = vsub.s32 %v1881, %v2686
    %v2688 = vrot.slane %v1304, %v2687
    %v2689 = vsel %vm1886, %v2688, %v2684
    %v2690 = vlaneseq
    %v2691 = vshrl.u32 %v2690, 7
    %v2692 = vsub.s32 %v1888, %v2691
    %v2693 = vrot.slane %v1307, %v2692
    %v2694 = vsel %vm1893, %v2693, %v2689
    %v2695 = vlaneseq
    %v2696 = vshrl.u32 %v2695, 7
    %v2697 = vsub.s32 %v1895, %v2696
    %v2698 = vrot.slane %v1310, %v2697
    %v2699 = vsel %vm1900, %v2698, %v2694
    %v2700 = vlaneseq
    %v2701 = vshrl.u32 %v2700, 7
    %v2702 = vsub.s32 %v1902, %v2701
    %v2703 = vrot.slane %v1313, %v2702
    %v2704 = vsel %vm1907, %v2703, %v2699
    %v2705 = vlaneseq
    %v2706 = vshrl.u32 %v2705, 7
    %v2707 = vsub.s32 %v1909, %v2706
    %v2708 = vrot.slane %v1316, %v2707
    %v2709 = vsel %vm1914, %v2708, %v2704
    %v2710 = vlaneseq
    %v2711 = vshrl.u32 %v2710, 7
    %v2712 = vsub.s32 %v1916, %v2711
    %v2713 = vrot.slane %v1319, %v2712
    %v2714 = vsel %vm1921, %v2713, %v2709
    %v2715 = vlaneseq
    %v2716 = vshrl.u32 %v2715, 7
    %v2717 = vsub.s32 %v1923, %v2716
    %v2718 = vrot.slane %v1322, %v2717
    %v2719 = vsel %vm1928, %v2718, %v2714
    %v2720 = vlaneseq
    %v2721 = vshrl.u32 %v2720, 7
    %v2722 = vsub.s32 %v1820, %v2721
    %v2723 = vrot.slane %v1325, %v2722
    %v2724 = vlaneseq
    %v2725 = vshrl.u32 %v2724, 7
    %v2726 = vsub.s32 %v1825, %v2725
    %v2727 = vrot.slane %v1328, %v2726
    %v2728 = vsel %vm1830, %v2727, %v2723
    %v2729 = vlaneseq
    %v2730 = vshrl.u32 %v2729, 7
    %v2731 = vsub.s32 %v1832, %v2730
    %v2732 = vrot.slane %v1331, %v2731
    %v2733 = vsel %vm1837, %v2732, %v2728
    %v2734 = vlaneseq
    %v2735 = vshrl.u32 %v2734, 7
    %v2736 = vsub.s32 %v1839, %v2735
    %v2737 = vrot.slane %v1334, %v2736
    %v2738 = vsel %vm1844, %v2737, %v2733
    %v2739 = vlaneseq
    %v2740 = vshrl.u32 %v2739, 7
    %v2741 = vsub.s32 %v1846, %v2740
    %v2742 = vrot.slane %v1337, %v2741
    %v2743 = vsel %vm1851, %v2742, %v2738
    %v2744 = vlaneseq
    %v2745 = vshrl.u32 %v2744, 7
    %v2746 = vsub.s32 %v1853, %v2745
    %v2747 = vrot.slane %v1340, %v2746
    %v2748 = vsel %vm1858, %v2747, %v2743
    %v2749 = vlaneseq
    %v2750 = vshrl.u32 %v2749, 7
    %v2751 = vsub.s32 %v1860, %v2750
    %v2752 = vrot.slane %v1343, %v2751
    %v2753 = vsel %vm1865, %v2752, %v2748
    %v2754 = vlaneseq
    %v2755 = vshrl.u32 %v2754, 7
    %v2756 = vsub.s32 %v1867, %v2755
    %v2757 = vrot.slane %v1346, %v2756
    %v2758 = vsel %vm1872, %v2757, %v2753
    %v2759 = vlaneseq
    %v2760 = vshrl.u32 %v2759, 7
    %v2761 = vsub.s32 %v1874, %v2760
    %v2762 = vrot.slane %v1349, %v2761
    %v2763 = vsel %vm1879, %v2762, %v2758
    %v2764 = vlaneseq
    %v2765 = vshrl.u32 %v2764, 7
    %v2766 = vsub.s32 %v1881, %v2765
    %v2767 = vrot.slane %v1352, %v2766
    %v2768 = vsel %vm1886, %v2767, %v2763
    %v2769 = vlaneseq
    %v2770 = vshrl.u32 %v2769, 7
    %v2771 = vsub.s32 %v1888, %v2770
    %v2772 = vrot.slane %v1355, %v2771
    %v2773 = vsel %vm1893, %v2772, %v2768
    %v2774 = vlaneseq
    %v2775 = vshrl.u32 %v2774, 7
    %v2776 = vsub.s32 %v1895, %v2775
    %v2777 = vrot.slane %v1358, %v2776
    %v2778 = vsel %vm1900, %v2777, %v2773
    %v2779 = vlaneseq
    %v2780 = vshrl.u32 %v2779, 7
    %v2781 = vsub.s32 %v1902, %v2780
    %v2782 = vrot.slane %v1361, %v2781
    %v2783 = vsel %vm1907, %v2782, %v2778
    %v2784 = vlaneseq
    %v2785 = vshrl.u32 %v2784, 7
    %v2786 = vsub.s32 %v1909, %v2785
    %v2787 = vrot.slane %v1364, %v2786
    %v2788 = vsel %vm1914, %v2787, %v2783
    %v2789 = vlaneseq
    %v2790 = vshrl.u32 %v2789, 7
    %v2791 = vsub.s32 %v1916, %v2790
    %v2792 = vrot.slane %v1367, %v2791
    %v2793 = vsel %vm1921, %v2792, %v2788
    %v2794 = vlaneseq
    %v2795 = vshrl.u32 %v2794, 7
    %v2796 = vsub.s32 %v1923, %v2795
    %v2797 = vrot.slane %v1370, %v2796
    %v2798 = vsel %vm1928, %v2797, %v2793
    %v2799 = vlaneseq
    %v2800 = vshrl.u32 %v2799, 7
    %v2801 = vsub.s32 %v1820, %v2800
    %v2802 = vrot.slane %v1373, %v2801
    %v2803 = vlaneseq
    %v2804 = vshrl.u32 %v2803, 7
    %v2805 = vsub.s32 %v1825, %v2804
    %v2806 = vrot.slane %v1376, %v2805
    %v2807 = vsel %vm1830, %v2806, %v2802
    %v2808 = vlaneseq
    %v2809 = vshrl.u32 %v2808, 7
    %v2810 = vsub.s32 %v1832, %v2809
    %v2811 = vrot.slane %v1379, %v2810
    %v2812 = vsel %vm1837, %v2811, %v2807
    %v2813 = vlaneseq
    %v2814 = vshrl.u32 %v2813, 7
    %v2815 = vsub.s32 %v1839, %v2814
    %v2816 = vrot.slane %v1382, %v2815
    %v2817 = vsel %vm1844, %v2816, %v2812
    %v2818 = vlaneseq
    %v2819 = vshrl.u32 %v2818, 7
    %v2820 = vsub.s32 %v1846, %v2819
    %v2821 = vrot.slane %v1385, %v2820
    %v2822 = vsel %vm1851, %v2821, %v2817
    %v2823 = vlaneseq
    %v2824 = vshrl.u32 %v2823, 7
    %v2825 = vsub.s32 %v1853, %v2824
    %v2826 = vrot.slane %v1388, %v2825
    %v2827 = vsel %vm1858, %v2826, %v2822
    %v2828 = vlaneseq
    %v2829 = vshrl.u32 %v2828, 7
    %v2830 = vsub.s32 %v1860, %v2829
    %v2831 = vrot.slane %v1391, %v2830
    %v2832 = vsel %vm1865, %v2831, %v2827
    %v2833 = vlaneseq
    %v2834 = vshrl.u32 %v2833, 7
    %v2835 = vsub.s32 %v1867, %v2834
    %v2836 = vrot.slane %v1394, %v2835
    %v2837 = vsel %vm1872, %v2836, %v2832
    %v2838 = vlaneseq
    %v2839 = vshrl.u32 %v2838, 7
    %v2840 = vsub.s32 %v1874, %v2839
    %v2841 = vrot.slane %v1397, %v2840
    %v2842 = vsel %vm1879, %v2841, %v2837
    %v2843 = vlaneseq
    %v2844 = vshrl.u32 %v2843, 7
    %v2845 = vsub.s32 %v1881, %v2844
    %v2846 = vrot.slane %v1400, %v2845
    %v2847 = vsel %vm1886, %v2846, %v2842
    %v2848 = vlaneseq
    %v2849 = vshrl.u32 %v2848, 7
    %v2850 = vsub.s32 %v1888, %v2849
    %v2851 = vrot.slane %v1403, %v2850
    %v2852 = vsel %vm1893, %v2851, %v2847
    %v2853 = vlaneseq
    %v2854 = vshrl.u32 %v2853, 7
    %v2855 = vsub.s32 %v1895, %v2854
    %v2856 = vrot.slane %v1406, %v2855
    %v2857 = vsel %vm1900, %v2856, %v2852
    %v2858 = vlaneseq
    %v2859 = vshrl.u32 %v2858, 7
    %v2860 = vsub.s32 %v1902, %v2859
    %v2861 = vrot.slane %v1409, %v2860
    %v2862 = vsel %vm1907, %v2861, %v2857
    %v2863 = vlaneseq
    %v2864 = vshrl.u32 %v2863, 7
    %v2865 = vsub.s32 %v1909, %v2864
    %v2866 = vrot.slane %v1412, %v2865
    %v2867 = vsel %vm1914, %v2866, %v2862
    %v2868 = vlaneseq
    %v2869 = vshrl.u32 %v2868, 7
    %v2870 = vsub.s32 %v1916, %v2869
    %v2871 = vrot.slane %v1415, %v2870
    %v2872 = vsel %vm1921, %v2871, %v2867
    %v2873 = vlaneseq
    %v2874 = vshrl.u32 %v2873, 7
    %v2875 = vsub.s32 %v1923, %v2874
    %v2876 = vrot.slane %v1418, %v2875
    %v2877 = vsel %vm1928, %v2876, %v2872
    %v2878 = vlaneseq
    %v2879 = vshrl.u32 %v2878, 7
    %v2880 = vsub.s32 %v1820, %v2879
    %v2881 = vrot.slane %v1421, %v2880
    %v2882 = vlaneseq
    %v2883 = vshrl.u32 %v2882, 7
    %v2884 = vsub.s32 %v1825, %v2883
    %v2885 = vrot.slane %v1424, %v2884
    %v2886 = vsel %vm1830, %v2885, %v2881
    %v2887 = vlaneseq
    %v2888 = vshrl.u32 %v2887, 7
    %v2889 = vsub.s32 %v1832, %v2888
    %v2890 = vrot.slane %v1427, %v2889
    %v2891 = vsel %vm1837, %v2890, %v2886
    %v2892 = vlaneseq
    %v2893 = vshrl.u32 %v2892, 7
    %v2894 = vsub.s32 %v1839, %v2893
    %v2895 = vrot.slane %v1430, %v2894
    %v2896 = vsel %vm1844, %v2895, %v2891
    %v2897 = vlaneseq
    %v2898 = vshrl.u32 %v2897, 7
    %v2899 = vsub.s32 %v1846, %v2898
    %v2900 = vrot.slane %v1433, %v2899
    %v2901 = vsel %vm1851, %v2900, %v2896
    %v2902 = vlaneseq
    %v2903 = vshrl.u32 %v2902, 7
    %v2904 = vsub.s32 %v1853, %v2903
    %v2905 = vrot.slane %v1436, %v2904
    %v2906 = vsel %vm1858, %v2905, %v2901
    %v2907 = vlaneseq
    %v2908 = vshrl.u32 %v2907, 7
    %v2909 = vsub.s32 %v1860, %v2908
    %v2910 = vrot.slane %v1439, %v2909
    %v2911 = vsel %vm1865, %v2910, %v2906
    %v2912 = vlaneseq
    %v2913 = vshrl.u32 %v2912, 7
    %v2914 = vsub.s32 %v1867, %v2913
    %v2915 = vrot.slane %v1442, %v2914
    %v2916 = vsel %vm1872, %v2915, %v2911
    %v2917 = vlaneseq
    %v2918 = vshrl.u32 %v2917, 7
    %v2919 = vsub.s32 %v1874, %v2918
    %v2920 = vrot.slane %v1445, %v2919
    %v2921 = vsel %vm1879, %v2920, %v2916
    %v2922 = vlaneseq
    %v2923 = vshrl.u32 %v2922, 7
    %v2924 = vsub.s32 %v1881, %v2923
    %v2925 = vrot.slane %v1448, %v2924
    %v2926 = vsel %vm1886, %v2925, %v2921
    %v2927 = vlaneseq
    %v2928 = vshrl.u32 %v2927, 7
    %v2929 = vsub.s32 %v1888, %v2928
    %v2930 = vrot.slane %v1451, %v2929
    %v2931 = vsel %vm1893, %v2930, %v2926
    %v2932 = vlaneseq
    %v2933 = vshrl.u32 %v2932, 7
    %v2934 = vsub.s32 %v1895, %v2933
    %v2935 = vrot.slane %v1454, %v2934
    %v2936 = vsel %vm1900, %v2935, %v2931
    %v2937 = vlaneseq
    %v2938 = vshrl.u32 %v2937, 7
    %v2939 = vsub.s32 %v1902, %v2938
    %v2940 = vrot.slane %v1457, %v2939
    %v2941 = vsel %vm1907, %v2940, %v2936
    %v2942 = vlaneseq
    %v2943 = vshrl.u32 %v2942, 7
    %v2944 = vsub.s32 %v1909, %v2943
    %v2945 = vrot.slane %v1460, %v2944
    %v2946 = vsel %vm1914, %v2945, %v2941
    %v2947 = vlaneseq
    %v2948 = vshrl.u32 %v2947, 7
    %v2949 = vsub.s32 %v1916, %v2948
    %v2950 = vrot.slane %v1463, %v2949
    %v2951 = vsel %vm1921, %v2950, %v2946
    %v2952 = vlaneseq
    %v2953 = vshrl.u32 %v2952, 7
    %v2954 = vsub.s32 %v1923, %v2953
    %v2955 = vrot.slane %v1466, %v2954
    %v2956 = vsel %vm1928, %v2955, %v2951
    %v2957 = vlaneseq
    %v2958 = vshrl.u32 %v2957, 7
    %v2959 = vsub.s32 %v1820, %v2958
    %v2960 = vrot.slane %v1469, %v2959
    %v2961 = vlaneseq
    %v2962 = vshrl.u32 %v2961, 7
    %v2963 = vsub.s32 %v1825, %v2962
    %v2964 = vrot.slane %v1472, %v2963
    %v2965 = vsel %vm1830, %v2964, %v2960
    %v2966 = vlaneseq
    %v2967 = vshrl.u32 %v2966, 7
    %v2968 = vsub.s32 %v1832, %v2967
    %v2969 = vrot.slane %v1475, %v2968
    %v2970 = vsel %vm1837, %v2969, %v2965
    %v2971 = vlaneseq
    %v2972 = vshrl.u32 %v2971, 7
    %v2973 = vsub.s32 %v1839, %v2972
    %v2974 = vrot.slane %v1478, %v2973
    %v2975 = vsel %vm1844, %v2974, %v2970
    %v2976 = vlaneseq
    %v2977 = vshrl.u32 %v2976, 7
    %v2978 = vsub.s32 %v1846, %v2977
    %v2979 = vrot.slane %v1481, %v2978
    %v2980 = vsel %vm1851, %v2979, %v2975
    %v2981 = vlaneseq
    %v2982 = vshrl.u32 %v2981, 7
    %v2983 = vsub.s32 %v1853, %v2982
    %v2984 = vrot.slane %v1484, %v2983
    %v2985 = vsel %vm1858, %v2984, %v2980
    %v2986 = vlaneseq
    %v2987 = vshrl.u32 %v2986, 7
    %v2988 = vsub.s32 %v1860, %v2987
    %v2989 = vrot.slane %v1487, %v2988
    %v2990 = vsel %vm1865, %v2989, %v2985
    %v2991 = vlaneseq
    %v2992 = vshrl.u32 %v2991, 7
    %v2993 = vsub.s32 %v1867, %v2992
    %v2994 = vrot.slane %v1490, %v2993
    %v2995 = vsel %vm1872, %v2994, %v2990
    %v2996 = vlaneseq
    %v2997 = vshrl.u32 %v2996, 7
    %v2998 = vsub.s32 %v1874, %v2997
    %v2999 = vrot.slane %v1493, %v2998
    %v3000 = vsel %vm1879, %v2999, %v2995
    %v3001 = vlaneseq
    %v3002 = vshrl.u32 %v3001, 7
    %v3003 = vsub.s32 %v1881, %v3002
    %v3004 = vrot.slane %v1496, %v3003
    %v3005 = vsel %vm1886, %v3004, %v3000
    %v3006 = vlaneseq
    %v3007 = vshrl.u32 %v3006, 7
    %v3008 = vsub.s32 %v1888, %v3007
    %v3009 = vrot.slane %v1499, %v3008
    %v3010 = vsel %vm1893, %v3009, %v3005
    %v3011 = vlaneseq
    %v3012 = vshrl.u32 %v3011, 7
    %v3013 = vsub.s32 %v1895, %v3012
    %v3014 = vrot.slane %v1502, %v3013
    %v3015 = vsel %vm1900, %v3014, %v3010
    %v3016 = vlaneseq
    %v3017 = vshrl.u32 %v3016, 7
    %v3018 = vsub.s32 %v1902, %v3017
    %v3019 = vrot.slane %v1505, %v3018
    %v3020 = vsel %vm1907, %v3019, %v3015
    %v3021 = vlaneseq
    %v3022 = vshrl.u32 %v3021, 7
    %v3023 = vsub.s32 %v1909, %v3022
    %v3024 = vrot.slane %v1508, %v3023
    %v3025 = vsel %vm1914, %v3024, %v3020
    %v3026 = vlaneseq
    %v3027 = vshrl.u32 %v3026, 7
    %v3028 = vsub.s32 %v1916, %v3027
    %v3029 = vrot.slane %v1511, %v3028
    %v3030 = vsel %vm1921, %v3029, %v3025
    %v3031 = vlaneseq
    %v3032 = vshrl.u32 %v3031, 7
    %v3033 = vsub.s32 %v1923, %v3032
    %v3034 = vrot.slane %v1514, %v3033
    %v3035 = vsel %vm1928, %v3034, %v3030
    %v3036 = vlaneseq
    %v3037 = vshrl.u32 %v3036, 7
    %v3038 = vsub.s32 %v1820, %v3037
    %v3039 = vrot.slane %v1517, %v3038
    %v3040 = vlaneseq
    %v3041 = vshrl.u32 %v3040, 7
    %v3042 = vsub.s32 %v1825, %v3041
    %v3043 = vrot.slane %v1520, %v3042
    %v3044 = vsel %vm1830, %v3043, %v3039
    %v3045 = vlaneseq
    %v3046 = vshrl.u32 %v3045, 7
    %v3047 = vsub.s32 %v1832, %v3046
    %v3048 = vrot.slane %v1523, %v3047
    %v3049 = vsel %vm1837, %v3048, %v3044
    %v3050 = vlaneseq
    %v3051 = vshrl.u32 %v3050, 7
    %v3052 = vsub.s32 %v1839, %v3051
    %v3053 = vrot.slane %v1526, %v3052
    %v3054 = vsel %vm1844, %v3053, %v3049
    %v3055 = vlaneseq
    %v3056 = vshrl.u32 %v3055, 7
    %v3057 = vsub.s32 %v1846, %v3056
    %v3058 = vrot.slane %v1529, %v3057
    %v3059 = vsel %vm1851, %v3058, %v3054
    %v3060 = vlaneseq
    %v3061 = vshrl.u32 %v3060, 7
    %v3062 = vsub.s32 %v1853, %v3061
    %v3063 = vrot.slane %v1532, %v3062
    %v3064 = vsel %vm1858, %v3063, %v3059
    %v3065 = vlaneseq
    %v3066 = vshrl.u32 %v3065, 7
    %v3067 = vsub.s32 %v1860, %v3066
    %v3068 = vrot.slane %v1535, %v3067
    %v3069 = vsel %vm1865, %v3068, %v3064
    %v3070 = vlaneseq
    %v3071 = vshrl.u32 %v3070, 7
    %v3072 = vsub.s32 %v1867, %v3071
    %v3073 = vrot.slane %v1538, %v3072
    %v3074 = vsel %vm1872, %v3073, %v3069
    %v3075 = vlaneseq
    %v3076 = vshrl.u32 %v3075, 7
    %v3077 = vsub.s32 %v1874, %v3076
    %v3078 = vrot.slane %v1541, %v3077
    %v3079 = vsel %vm1879, %v3078, %v3074
    %v3080 = vlaneseq
    %v3081 = vshrl.u32 %v3080, 7
    %v3082 = vsub.s32 %v1881, %v3081
    %v3083 = vrot.slane %v1544, %v3082
    %v3084 = vsel %vm1886, %v3083, %v3079
    %v3085 = vlaneseq
    %v3086 = vshrl.u32 %v3085, 7
    %v3087 = vsub.s32 %v1888, %v3086
    %v3088 = vrot.slane %v1547, %v3087
    %v3089 = vsel %vm1893, %v3088, %v3084
    %v3090 = vlaneseq
    %v3091 = vshrl.u32 %v3090, 7
    %v3092 = vsub.s32 %v1895, %v3091
    %v3093 = vrot.slane %v1550, %v3092
    %v3094 = vsel %vm1900, %v3093, %v3089
    %v3095 = vlaneseq
    %v3096 = vshrl.u32 %v3095, 7
    %v3097 = vsub.s32 %v1902, %v3096
    %v3098 = vrot.slane %v1553, %v3097
    %v3099 = vsel %vm1907, %v3098, %v3094
    %v3100 = vlaneseq
    %v3101 = vshrl.u32 %v3100, 7
    %v3102 = vsub.s32 %v1909, %v3101
    %v3103 = vrot.slane %v1556, %v3102
    %v3104 = vsel %vm1914, %v3103, %v3099
    %v3105 = vlaneseq
    %v3106 = vshrl.u32 %v3105, 7
    %v3107 = vsub.s32 %v1916, %v3106
    %v3108 = vrot.slane %v1559, %v3107
    %v3109 = vsel %vm1921, %v3108, %v3104
    %v3110 = vlaneseq
    %v3111 = vshrl.u32 %v3110, 7
    %v3112 = vsub.s32 %v1923, %v3111
    %v3113 = vrot.slane %v1562, %v3112
    %v3114 = vsel %vm1928, %v3113, %v3109
    %vm3115 = vcmask 1041409
    %v3116 = vsel %vm3115, %v2008, %v1929
    %vm3117 = vcmask 1042434
    %v3118 = vsel %vm3117, %v2087, %v3116
    %vm3119 = vcmask 1043459
    %v3120 = vsel %vm3119, %v2166, %v3118
    %vm3121 = vcmask 1044484
    %v3122 = vsel %vm3121, %v2245, %v3120
    %vm3123 = vcmask 1045509
    %v3124 = vsel %vm3123, %v2324, %v3122
    %vm3125 = vcmask 1046534
    %v3126 = vsel %vm3125, %v2403, %v3124
    %vm3127 = vcmask 1047559
    %v3128 = vsel %vm3127, %v2482, %v3126
    %v3129 = vsel %vm3115, %v2640, %v2561
    %v3130 = vsel %vm3117, %v2719, %v3129
    %v3131 = vsel %vm3119, %v2798, %v3130
    %v3132 = vsel %vm3121, %v2877, %v3131
    %v3133 = vsel %vm3123, %v2956, %v3132
    %v3134 = vsel %vm3125, %v3035, %v3133
    %v3135 = vsel %vm3127, %v3114, %v3134
    %v3138 = vadd.f32 %v792, %v3128
    %v3139 = vadd.f32 %v793, %v3135
    %3140 = vst [vmem:[#allocation2] sm:$0xff] %v3138
    %3141 = vst [vmem:[#allocation2 + $0x8] sm:$0xff] %v3139
    // Predicated region
    $region22: #{tpu_custom_call.1} parent=1 // pred_check
      %p3142 = pneg %p18
    $region23: #{tpu_custom_call.1} parent=1 // pred_check_branch
      %3144 = sbr.rel (%p3142) target = $region25
    $region24: #{tpu_custom_call.1} parent=1 // pred_region
      %v3145 = vld [vmem:[#allocation2] sm:$0xff]
      %v3146 = vld [vmem:[#allocation2 + $0x8] sm:$0xff]
      %v3147 = vld [vmem:[%s1] sm:$0xff]
      %v3148 = vld [vmem:[%s1 + $0x8] sm:$0xff]
      %v3149 = vld [vmem:[%s1 + $0x10] sm:$0xff]
      %v3150 = vld [vmem:[%s1 + $0x18] sm:$0xff]
      %v3151 = vld [vmem:[%s1 + $0x20] sm:$0xff]
      %v3152 = vld [vmem:[%s1 + $0x28] sm:$0xff]
      %v3153 = vld [vmem:[%s1 + $0x30] sm:$0xff]
      %v3154 = vld [vmem:[%s1 + $0x38] sm:$0xff]
      %v3155 = vld [vmem:[%s1 + $0x40] sm:$0xff]
      %v3156 = vld [vmem:[%s1 + $0x48] sm:$0xff]
      %v3157 = vld [vmem:[%s1 + $0x50] sm:$0xff]
      %v3158 = vld [vmem:[%s1 + $0x58] sm:$0xff]
      %v3159 = vld [vmem:[%s1 + $0x60] sm:$0xff]
      %v3160 = vld [vmem:[%s1 + $0x68] sm:$0xff]
      %v3161 = vld [vmem:[%s1 + $0x70] sm:$0xff]
      %v3162 = vld [vmem:[%s1 + $0x78] sm:$0xff]
      %v3163 = vld [vmem:[%s1 + $0x80] sm:$0xff]
      %v3164 = vld [vmem:[%s1 + $0x88] sm:$0xff]
      %v3165 = vld [vmem:[%s1 + $0x90] sm:$0xff]
      %v3166 = vld [vmem:[%s1 + $0x98] sm:$0xff]
      %v3167 = vld [vmem:[%s1 + $0xa0] sm:$0xff]
      %v3168 = vld [vmem:[%s1 + $0xa8] sm:$0xff]
      %v3169 = vld [vmem:[%s1 + $0xb0] sm:$0xff]
      %v3170 = vld [vmem:[%s1 + $0xb8] sm:$0xff]
      %v3171 = vld [vmem:[%s1 + $0xc0] sm:$0xff]
      %v3172 = vld [vmem:[%s1 + $0xc8] sm:$0xff]
      %v3173 = vld [vmem:[%s1 + $0xd0] sm:$0xff]
      %v3174 = vld [vmem:[%s1 + $0xd8] sm:$0xff]
      %v3175 = vld [vmem:[%s1 + $0xe0] sm:$0xff]
      %v3176 = vld [vmem:[%s1 + $0xe8] sm:$0xff]
      %v3177 = vld [vmem:[%s1 + $0xf0] sm:$0xff]
      %v3178 = vld [vmem:[%s1 + $0xf8] sm:$0xff]
      %3179 = vmatprep.subr.mxu0 %v3178
      %3180 = vmatpush1.msra.mxu0 %v3177
      %3181 = vmatprep.subr.mxu0 %v3176
      %3182 = vmatpush1.msra.mxu0 %v3175
      %3183 = vmatprep.subr.mxu0 %v3174
      %3184 = vmatpush1.msra.mxu0 %v3173
      %3185 = vmatprep.subr.mxu0 %v3172
      %3186 = vmatpush1.msra.mxu0 %v3171
      %3187 = vmatprep.subr.mxu0 %v3170
      %3188 = vmatpush1.msra.mxu0 %v3169
      %3189 = vmatprep.subr.mxu0 %v3168
      %3190 = vmatpush1.msra.mxu0 %v3167
      %3191 = vmatprep.subr.mxu0 %v3166
      %3192 = vmatpush1.msra.mxu0 %v3165
      %3193 = vmatprep.subr.mxu0 %v3164
      %3194 = vmatpush1.msra.mxu0 %v3163
      %3195 = vmatprep.subr.mxu0 %v3162
      %3196 = vmatpush1.msra.mxu0 %v3161
      %3197 = vmatprep.subr.mxu0 %v3160
      %3198 = vmatpush1.msra.mxu0 %v3159
      %3199 = vmatprep.subr.mxu0 %v3158
      %3200 = vmatpush1.msra.mxu0 %v3157
      %3201 = vmatprep.subr.mxu0 %v3156
      %3202 = vmatpush1.msra.mxu0 %v3155
      %3203 = vmatprep.subr.mxu0 %v3154
      %3204 = vmatpush1.msra.mxu0 %v3153
      %3205 = vmatprep.subr.mxu0 %v3152
      %3206 = vmatpush1.msra.mxu0 %v3151
      %3207 = vmatprep.subr.mxu0 %v3150
      %3208 = vmatpush1.msra.mxu0 %v3149
      %3209 = vmatprep.subr.mxu0 %v3148
      %3210 = vmatpush1.msra.mxu0 %v3147
      %3211 = vmatprep.subr.mxu0 0.0
      %3212 = vmatpush2.msra.mxu0 0.0
      %3213 = vmatprep.subr.mxu0 0.0
      %3214 = vmatpush2.msra.mxu0 0.0
      %3215 = vmatprep.subr.mxu0 0.0
      %3216 = vmatpush2.msra.mxu0 0.0
      %3217 = vmatprep.subr.mxu0 0.0
      %3218 = vmatpush2.msra.mxu0 0.0
      %3219 = vmatprep.subr.mxu0 0.0
      %3220 = vmatpush2.msra.mxu0 0.0
      %3221 = vmatprep.subr.mxu0 0.0
      %3222 = vmatpush2.msra.mxu0 0.0
      %3223 = vmatprep.subr.mxu0 0.0
      %3224 = vmatpush2.msra.mxu0 0.0
      %3225 = vmatprep.subr.mxu0 0.0
      %3226 = vmatpush2.msra.mxu0 0.0
      %3227 = vmatprep.subr.mxu0 0.0
      %3228 = vmatpush2.msra.mxu0 0.0
      %3229 = vmatprep.subr.mxu0 0.0
      %3230 = vmatpush2.msra.mxu0 0.0
      %3231 = vmatprep.subr.mxu0 0.0
      %3232 = vmatpush2.msra.mxu0 0.0
      %3233 = vmatprep.subr.mxu0 0.0
      %3234 = vmatpush2.msra.mxu0 0.0
      %3235 = vmatprep.subr.mxu0 0.0
      %3236 = vmatpush2.msra.mxu0 0.0
      %3237 = vmatprep.subr.mxu0 0.0
      %3238 = vmatpush2.msra.mxu0 0.0
      %3239 = vmatprep.subr.mxu0 0.0
      %3240 = vmatpush2.msra.mxu0 0.0
      %3241 = vmatprep.subr.mxu0 0.0
      %3242 = vmatpush2.msra.mxu0 0.0
      %3243 = vmatprep.mubr.f32.mxu0 0.0
      %3244 = vmatmul.mubr.f32.gmra.mxu0 %v3145
      %v3245 = vpop.f32.mrf.mxu0
      %v3246 = vadd.f32 0.0, %v3245
      %v3247 = vpop.f32.mrf.mxu0
      %v3248 = vadd.f32 0.0, %v3247
      %3249 = vmatprep.mubr.f32.mxu0 0.0
      %3250 = vmatmul.mubr.f32.gmra.mxu0 %v3146
      %v3251 = vpop.f32.mrf.mxu0
      %v3252 = vadd.f32 0.0, %v3251
      %v3253 = vpop.f32.mrf.mxu0
      %v3254 = vadd.f32 0.0, %v3253
      %3255 = vdwg.mxu0
      %v3256 = vld [vmem:[%s2] sm:$0x3]
      %v3258 = vlaneseq
      %v3259 = vshrl.u32 %v3258, 7
      %v3260 = vsub.s32 0, %v3259
      %v3261 = vrot.slane %v3256, %v3260
      %v3262 = vlaneseq
      %v3263 = vshrl.u32 %v3262, 7
      %v3264 = vsub.s32 1, %v3263
      %v3265 = vrot.slane %v3256, %v3264
      %v3268 = vmul.f32 %v3246, %v3261
      %v3269 = vmul.f32 %v3248, %v3265
      %v3270 = vmul.f32 %v3252, %v3261
      %v3271 = vmul.f32 %v3254, %v3265
      %v3272 = vld [vmem:[%s3] sm:$0x3]
      %v3274 = vlaneseq
      %v3275 = vshrl.u32 %v3274, 7
      %v3276 = vsub.s32 0, %v3275
      %v3277 = vrot.slane %v3272, %v3276
      %v3278 = vlaneseq
      %v3279 = vshrl.u32 %v3278, 7
      %v3280 = vsub.s32 1, %v3279
      %v3281 = vrot.slane %v3272, %v3280
      %v3284 = vadd.f32 %v3268, %v3277
      %v3285 = vadd.f32 %v3269, %v3281
      %v3286 = vadd.f32 %v3270, %v3277
      %v3287 = vadd.f32 %v3271, %v3281
      %v3288 = vmul.f32 %v3284, %v3284
      %v3289 = vmul.f32 %v3285, %v3285
      %v3290 = vmul.f32 %v3286, %v3286
      %v3291 = vmul.f32 %v3287, %v3287
      %v3292 = vadd.f32 %v3288, %v3289
      %3293 = vadd.xlane.f32.xlu0 %v3292
      %v3294 = vpop.xlane.xlu0 %3293
      %v3295 = vadd.f32 %v3290, %v3291
      %3296 = vadd.xlane.f32.xlu0 %v3295
      %v3297 = vpop.xlane.xlu0 %3296
      %v3298 = vmax.f32 %v3294, 1e-24
      %v3299 = vmax.f32 %v3297, 1e-24
      %v3300 = vrsqrt.pop %v3298
      %v3301 = vrsqrt.pop %v3299
      %v3302 = vmul.f32 %v3284, %v3300
      %v3303 = vmul.f32 %v3285, %v3300
      %v3304 = vmul.f32 %v3286, %v3301
      %v3305 = vmul.f32 %v3287, %v3301
      %3306 = vst [vmem:[#allocation3] sm:$0xff] %v3302
      %3307 = vst [vmem:[#allocation3 + $0x8] sm:$0xff] %v3303
      %3308 = vst [vmem:[#allocation3 + $0x10] sm:$0xff] %v3304
      %3309 = vst [vmem:[#allocation3 + $0x18] sm:$0xff] %v3305
    $region25: #{tpu_custom_call.1} parent=1 // pred_fallthru
      _
    // Predicated region
    $region26: #{tpu_custom_call.1} parent=1 // pred_check
      _
    $region27: #{tpu_custom_call.1} parent=1 // pred_check_branch
      %3311 = sbr.rel (0) target = $region29
    $region28: #{tpu_custom_call.1} parent=1 // pred_region
      %s3313 = ssub.s32 512, 512
      %3314 = vsyncadd [#allocation4], %s3313
      %s3315 = sshll.u32 [#allocation3], 4
      %s3316 = int_to_ptr.vmem [resolvable:$true] %s3315
      %3321 = dma.vmem_to_hbm [thread:$0]  %s3316, 512, %s4, [#allocation4], 256, 256, 16
    $region29: #{tpu_custom_call.1} parent=1 // pred_fallthru
      _
    // Predicated region
    $region30: #{tpu_custom_call.1} parent=1 // pred_check
      _
    $region31: #{tpu_custom_call.1} parent=1 // pred_check_branch
      %3323 = sbr.rel (0) target = $region33
    $region32: #{tpu_custom_call.1} parent=1 // pred_region
      %3324 = dma.done [#allocation4], 512
    $region33: #{tpu_custom_call.1} parent=1 // pred_fallthru
      _
    %3325 = vsyncpa [#allocation4], 1

</llo_original>
